<compile_context>
chip_gen: v5e
topology: v5e:2x2
jax: 0.10.0
libtpu: 0.0.40
codegen_flags: <defaults>
</compile_context>

<pallas_src>
import functools

import jax
import jax.numpy as jnp
from jax.experimental import pallas as pl
from jax.experimental.pallas import tpu as pltpu


def _round_up(x, m):
    return ((x + m - 1) // m) * m


def _round_down(x, m):
    return (x // m) * m


# --------------------------------------------------------------------------
# Kernel
# --------------------------------------------------------------------------
def mlp_head_kernel(x_ref, g_ref, beta_ref, w1_ref, b1_ref, w2_ref, b2_ref,
                    w3_ref, b3_ref, o_ref, acc_ref, *, t_len, group):
    """Grid = (batch tile i [parallel], time tile t [arbitrary / reduction])."""
    t = pl.program_id(1)

    # ---- time reduction -------------------------------------------------
    @pl.when(t == 0)
    def _():
        acc_ref[...] = jnp.zeros_like(acc_ref)

    # Hot loop stays pure vld + vadd (VALU): accumulate `group` sublane partial
    # sums per batch row into a (TB, group, D) f32 scratch with whole-vreg adds.
    # No cross-sublane (XLU) reduce and no masked row scatter per step; the
    # collapse over the `group` partials happens once, in the epilogue.
    tt = x_ref.shape[1]
    partial = x_ref[:, 0:group, :].astype(jnp.float32)
    for g in range(1, tt // group):
        partial = partial + x_ref[:, g * group:(g + 1) * group, :].astype(jnp.float32)
    acc_ref[...] += partial

    # ---- last time step: LayerNorm -> MLP -> scalar head ----------------
    @pl.when(t == pl.num_programs(1) - 1)
    def _():
        h = jnp.sum(acc_ref[...], axis=1) * (1.0 / t_len)        # mean over T, (TB, D)

        # LayerNorm (eps=1e-5, affine) in f32 (v5e VPU/EUP have no bf16 path).
        mu = jnp.mean(h, axis=-1, keepdims=True)
        var = jnp.mean((h - mu) * (h - mu), axis=-1, keepdims=True)
        h = (h - mu) * jax.lax.rsqrt(var + 1e-5)
        h = h * g_ref[...] + beta_ref[...]

        # Linear(D, D) + SiLU  (bf16 weights, f32 accumulation on the MXU).
        h = jnp.dot(h.astype(w1_ref.dtype), w1_ref[...],
                    preferred_element_type=jnp.float32) + b1_ref[...]
        h = h * jax.nn.sigmoid(h)

        # Linear(D, D) + SiLU
        h = jnp.dot(h.astype(w2_ref.dtype), w2_ref[...],
                    preferred_element_type=jnp.float32) + b2_ref[...]
        h = h * jax.nn.sigmoid(h)

        # Linear(D, 1): an N=1 MXU matmul wastes the array -> VPU mul + lane
        # reduce, written lane-dense as one (1, TB) row per batch tile.
        logits = jnp.sum(h * w3_ref[...], axis=-1)                # (TB,)
        row = logits[None, :] + b3_ref[...]                       # (1, TB)
        o_ref[0] = row.astype(o_ref.dtype)


# --------------------------------------------------------------------------
# Tile / VMEM derivation (per generation via get_tpu_info)
# --------------------------------------------------------------------------
def _derive_tiles_and_vmem(B, T, D, x_itemsize, w_itemsize):
    # Packed-sublane multiple of the streamed x dtype: 8 (f32), 16 (bf16), 32 (i8/fp8).
    sub = max(8, 32 // x_itemsize)

    try:
        vmem_cap = int(pltpu.get_tpu_info().vmem_capacity_bytes)
    except Exception:
        vmem_cap = 64 * 1024 * 1024          # v7x floor; safe lower bound everywhere
    budget = int(vmem_cap * 0.70)            # headroom for compiler temps

    Tp = _round_up(T, sub)
    Bp = _round_up(B, sub)

    # Time tile: just big enough that each per-batch-row DMA segment is
    # >= ~32 KiB (efficient strided DMA). Growing TT further only amortizes
    # ~0.35us/step; TB is where extra VMEM should go.
    seg_target = 32 * 1024
    tt_seg = (seg_target + D * x_itemsize - 1) // (D * x_itemsize)
    TT = max(sub, min(Tp, tt_seg, 256))
    TT = _round_up(TT, sub)

    # VMEM-resident constants (single-buffered): two DxD weights + small vectors.
    const_bytes = 2 * D * D * w_itemsize + 6 * D * 4 + 64

    # Per batch-row cost: x stream buffers + the (group, D) f32 partial-sum scratch.
    def per_row(nbuf):
        return nbuf * TT * D * x_itemsize + sub * D * 4

    x_buffers = 3                              # triple-buffer x if it fits
    avail = budget - const_bytes
    tb_fit = max(avail, 0) // per_row(x_buffers)
    if tb_fit < sub:
        x_buffers = 2
        tb_fit = max(avail, 0) // per_row(x_buffers)
    if tb_fit < sub:
        # TODO(synk): for very large D (>= ~4096 on v7x) the whole-weight-resident
        # design stops fitting; tile w1/w2 over an extra grid axis (or split the
        # post-reduction MLP into a second pallas_call) instead of spilling.
        tb_fit = sub

    # Prefer spending VMEM on TB (amortizes the LayerNorm+MLP epilogue and fills
    # the MXU M dim).  Cap TB so the "parallel" batch axis still splits across
    # >= 2 TensorCores (v7x megacore) whenever B is large enough.
    TB = max(sub, min(512, _round_down(tb_fit, sub)))
    TB = min(TB, Bp)
    if Bp > sub:
        TB = min(TB, max(sub, _round_up((Bp + 1) // 2, sub)))

    # Residency estimate -> explicit scoped-VMEM limit (the 16/32 MiB defaults
    # would otherwise force tiny tiles or OOM at realistic D).  Assume
    # double-buffered constants in the estimate in case the single-buffer
    # request is ignored.
    est = 2 * const_bytes + TB * per_row(x_buffers) + 2 * TB * 4
    vmem_limit = min(vmem_cap, max(32 * 1024 * 1024, int(est * 1.4)))

    return TB, TT, x_buffers, vmem_limit, sub


# --------------------------------------------------------------------------
# Wrapper
# --------------------------------------------------------------------------
def mlp_head(x, params, *, weight_dtype=jnp.bfloat16, x_compute_dtype=None):
    """x: (B, T, D); params: dict of arrays.  Returns (B, 1) float32."""
    B, T, D = x.shape

    # Optionally stream x as bf16 (halves HBM traffic on this mem-bound kernel;
    # small numerics delta vs an exact-f32 reference).  Off by default here to
    # keep the validation against the f32 reference tight.
    if x_compute_dtype is not None and x.dtype != x_compute_dtype:
        x = x.astype(x_compute_dtype)

    w_dt = weight_dtype if weight_dtype is not None else params["w1"].dtype
    TB, TT, x_buffers, vmem_limit, group = _derive_tiles_and_vmem(
        B, T, D, x.dtype.itemsize, jnp.dtype(w_dt).itemsize)

    Bp, Tp = _round_up(B, TB), _round_up(T, TT)
    if (Bp, Tp) != (B, T):
        # Zero-padded time rows contribute nothing to the time sum; padded batch
        # rows produce finite garbage that is sliced off below.
        x = jnp.pad(x, ((0, Bp - B), (0, Tp - T), (0, 0)))
    nb, nt = Bp // TB, Tp // TT
    x_buffers = min(x_buffers, max(2, nt))     # no point in >2 buffers for tiny nt

    gamma, beta = params["gamma"], params["beta"]
    w1, b1 = params["w1"], params["b1"]
    w2, b2 = params["w2"], params["b2"]
    w3, b3 = params["w3"], params["b3"]
    w3_row = w3.reshape(1, D)                  # lane-dense row for the VPU reduction
    if weight_dtype is not None:
        w1 = w1.astype(weight_dtype)
        w2 = w2.astype(weight_dtype)

    def build_specs(use_pipeline_mode):
        def spec(shape, index_map, buffers):
            if use_pipeline_mode and buffers is not None and buffers != 2:
                return pl.BlockSpec(shape, index_map,
                                    pipeline_mode=pl.Buffered(buffers))
            return pl.BlockSpec(shape, index_map)

        # Constant block index => DMA'd once, VMEM-resident across the grid;
        # single-buffered so the second (never used) buffer is not allocated.
        const = lambda shape: spec(shape, lambda i, t: tuple(0 for _ in shape), 1)

        in_specs = [
            spec((TB, TT, D), lambda i, t: (i, t, 0), x_buffers),  # x stream
            const((1, D)),      # gamma
            const((1, D)),      # beta
            const((D, D)),      # w1
            const((1, D)),      # b1
            const((D, D)),      # w2
            const((1, D)),      # b2
            const((1, D)),      # w3 as a row
            const((1, 1)),      # b3
        ]
        out_spec = pl.BlockSpec((1, 1, TB), lambda i, t: (i, 0, 0))
        return in_specs, out_spec

    def run(use_pipeline_mode):
        in_specs, out_spec = build_specs(use_pipeline_mode)
        return pl.pallas_call(
            functools.partial(mlp_head_kernel, t_len=float(T), group=group),
            out_shape=jax.ShapeDtypeStruct((nb, 1, TB), jnp.float32),
            grid=(nb, nt),
            in_specs=in_specs,
            out_specs=out_spec,
            scratch_shapes=[pltpu.VMEM((TB, group, D), jnp.float32)],
            compiler_params=pltpu.CompilerParams(
                dimension_semantics=("parallel", "arbitrary"),
                vmem_limit_bytes=vmem_limit),
        )(x, gamma, beta, w1, b1, w2, b2, w3_row, b3)

    try:
        out = run(True)
    except Exception:
        # This jax build rejected pipeline_mode / Buffered: fall back to the
        # default double-buffered pipeline (correctness unchanged).
        out = run(False)

    return out.reshape(Bp)[:B].reshape(B, 1)


# --------------------------------------------------------------------------
# Parameters & pure-JAX reference
# --------------------------------------------------------------------------
def init_params(dim, key):
    """Deterministic parameters matching the PyTorch module's shapes.

    nn.Linear(in, out) default init: U(-1/sqrt(in), 1/sqrt(in)) for weight & bias.
    Weights are stored transposed to (in, out) for the kernel.
    """
    ks = jax.random.split(key, 6)
    bound = 1.0 / (dim ** 0.5)

    def lin(kw, kb, din, dout):
        w = jax.random.uniform(kw, (din, dout), jnp.float32, -bound, bound)
        b = jax.random.uniform(kb, (1, dout), jnp.float32, -bound, bound)
        return w, b

    w1, b1 = lin(ks[0], ks[1], dim, dim)
    w2, b2 = lin(ks[2], ks[3], dim, dim)
    w3, b3 = lin(ks[4], ks[5], dim, 1)

    return {
        "gamma": jnp.ones((1, dim), jnp.float32),   # LayerNorm weight
        "beta": jnp.zeros((1, dim), jnp.float32),   # LayerNorm bias
        "w1": w1, "b1": b1,
        "w2": w2, "b2": b2,
        "w3": w3, "b3": b3,
    }


def mlp_head_ref(x, params):
    """Pure-JAX f32 reference for validation."""
    h = jnp.mean(x.astype(jnp.float32), axis=1)
    mu = jnp.mean(h, axis=-1, keepdims=True)
    var = jnp.mean((h - mu) ** 2, axis=-1, keepdims=True)
    h = (h - mu) / jnp.sqrt(var + 1e-5) * params["gamma"] + params["beta"]
    h = h @ params["w1"] + params["b1"]
    h = h * jax.nn.sigmoid(h)
    h = h @ params["w2"] + params["b2"]
    h = h * jax.nn.sigmoid(h)
    return h @ params["w3"] + params["b3"]


if __name__ == "__main__":
    B, T, D = 2, 8, 32
    key = jax.random.PRNGKey(0)
    kx, kp = jax.random.split(key)
    x = jax.random.normal(kx, (B, T, D), jnp.float32)
    params = init_params(D, kp)

    out = jax.block_until_ready(mlp_head(x, params))
    ref = mlp_head_ref(x, params)

    assert out.shape == (B, 1), out.shape
    # bf16 weights (MXU-native) vs. the exact-f32 reference -> relaxed tolerance.
    assert jnp.allclose(out, ref, atol=2e-2, rtol=2e-2), (out, ref)

    print("KERNEL_OK")
</pallas_src>

<mosaic_0001>
module attributes {stable_mosaic.version = 11 : i64} {
  func.func @mlp_head_kernel(%arg0: i32, %arg1: i32, %arg2: memref<8x8x32xf32, #tpu.memory_space<vmem>>, %arg3: memref<1x32xf32, #tpu.memory_space<vmem>>, %arg4: memref<1x32xf32, #tpu.memory_space<vmem>>, %arg5: memref<32x32xbf16, #tpu.memory_space<vmem>>, %arg6: memref<1x32xf32, #tpu.memory_space<vmem>>, %arg7: memref<32x32xbf16, #tpu.memory_space<vmem>>, %arg8: memref<1x32xf32, #tpu.memory_space<vmem>>, %arg9: memref<1x32xf32, #tpu.memory_space<vmem>>, %arg10: memref<1x1xf32, #tpu.memory_space<vmem>>, %arg11: memref<1x1x8xf32, #tpu.memory_space<vmem>>, %arg12: memref<8x8x32xf32, #tpu.memory_space<vmem>>) attributes {dimension_semantics = [#tpu.dimension_semantics<parallel>, #tpu.dimension_semantics<arbitrary>], iteration_bounds = array<i64: 1, 1>, scalar_prefetch = 0 : i64, scratch_operands = 1 : i64, tpu.core_type = #tpu.core_type<tc>, window_params = [{transform_indices = @transform_0, window_bounds = array<i64: 8, 8, 32>}, {pipeline_mode = #tpu.pipeline_mode<synchronous>, transform_indices = @transform_1, window_bounds = array<i64: 1, 32>}, {pipeline_mode = #tpu.pipeline_mode<synchronous>, transform_indices = @transform_2, window_bounds = array<i64: 1, 32>}, {pipeline_mode = #tpu.pipeline_mode<synchronous>, transform_indices = @transform_3, window_bounds = array<i64: 32, 32>}, {pipeline_mode = #tpu.pipeline_mode<synchronous>, transform_indices = @transform_4, window_bounds = array<i64: 1, 32>}, {pipeline_mode = #tpu.pipeline_mode<synchronous>, transform_indices = @transform_5, window_bounds = array<i64: 32, 32>}, {pipeline_mode = #tpu.pipeline_mode<synchronous>, transform_indices = @transform_6, window_bounds = array<i64: 1, 32>}, {pipeline_mode = #tpu.pipeline_mode<synchronous>, transform_indices = @transform_7, window_bounds = array<i64: 1, 32>}, {pipeline_mode = #tpu.pipeline_mode<synchronous>, transform_indices = @transform_8, window_bounds = array<i64: 1, 1>}, {transform_indices = @transform_9, window_bounds = array<i64: 1, 1, 8>}]} {
    %c0_i32 = arith.constant 0 : i32
    %0 = arith.cmpi eq, %arg1, %c0_i32 : i32
    %1 = arith.extui %0 : i1 to i32
    %c0_i32_0 = arith.constant 0 : i32
    %2 = arith.cmpi ne, %1, %c0_i32_0 : i32
    scf.if %2 {
      %cst = arith.constant 0.000000e+00 : f32
      %10 = vector.broadcast %cst : f32 to vector<8x8x32xf32>
      %c0_11 = arith.constant 0 : index
      %c0_12 = arith.constant 0 : index
      %c0_13 = arith.constant 0 : index
      %11 = vector.load %arg12[%c0_11, %c0_12, %c0_13] : memref<8x8x32xf32, #tpu.memory_space<vmem>>, vector<8x8x32xf32>
      tpu.vector_store %arg12[%c0_11, %c0_12, %c0_13], %10 {strides = array<i32>} : memref<8x8x32xf32, #tpu.memory_space<vmem>>, vector<8x8x32xf32>,
    } else {
    }
    %c0 = arith.constant 0 : index
    %c0_1 = arith.constant 0 : index
    %c0_2 = arith.constant 0 : index
    %3 = vector.load %arg2[%c0, %c0_1, %c0_2] : memref<8x8x32xf32, #tpu.memory_space<vmem>>, vector<8x8x32xf32>
    %c0_3 = arith.constant 0 : index
    %c0_4 = arith.constant 0 : index
    %c0_5 = arith.constant 0 : index
    %4 = vector.load %arg12[%c0_3, %c0_4, %c0_5] : memref<8x8x32xf32, #tpu.memory_space<vmem>>, vector<8x8x32xf32>
    %5 = arith.addf %4, %3 : vector<8x8x32xf32>
    %c0_6 = arith.constant 0 : index
    %c0_7 = arith.constant 0 : index
    %c0_8 = arith.constant 0 : index
    %6 = vector.load %arg12[%c0_6, %c0_7, %c0_8] : memref<8x8x32xf32, #tpu.memory_space<vmem>>, vector<8x8x32xf32>
    tpu.vector_store %arg12[%c0_6, %c0_7, %c0_8], %5 {strides = array<i32>} : memref<8x8x32xf32, #tpu.memory_space<vmem>>, vector<8x8x32xf32>,
    %c0_i32_9 = arith.constant 0 : i32
    %7 = arith.cmpi eq, %arg1, %c0_i32_9 : i32
    %8 = arith.extui %7 : i1 to i32
    %c0_i32_10 = arith.constant 0 : i32
    %9 = arith.cmpi ne, %8, %c0_i32_10 : i32
    scf.if %9 {
      %c0_11 = arith.constant 0 : index
      %c0_12 = arith.constant 0 : index
      %c0_13 = arith.constant 0 : index
      %10 = vector.load %arg12[%c0_11, %c0_12, %c0_13] : memref<8x8x32xf32, #tpu.memory_space<vmem>>, vector<8x8x32xf32>
      %cst = arith.constant dense<0.000000e+00> : vector<8x32xf32>
      %11 = vector.multi_reduction <add>, %10, %cst [1] : vector<8x8x32xf32> to vector<8x32xf32>
      %cst_14 = arith.constant 1.250000e-01 : f32
      %12 = vector.broadcast %cst_14 : f32 to vector<8x32xf32>
      %13 = arith.mulf %11, %12 : vector<8x32xf32>
      %cst_15 = arith.constant dense<0.000000e+00> : vector<8xf32>
      %14 = vector.multi_reduction <add>, %13, %cst_15 [1] : vector<8x32xf32> to vector<8xf32>
      %15 = vector.shape_cast %14 : vector<8xf32> to vector<8x1xf32>
      %cst_16 = arith.constant 3.200000e+01 : f32
      %16 = vector.broadcast %cst_16 : f32 to vector<8x1xf32>
      %17 = arith.divf %15, %16 : vector<8x1xf32>
      %18 = vector.broadcast %17 : vector<8x1xf32> to vector<8x32xf32>
      %19 = arith.subf %13, %18 : vector<8x32xf32>
      %20 = vector.broadcast %17 : vector<8x1xf32> to vector<8x32xf32>
      %21 = arith.subf %13, %20 : vector<8x32xf32>
      %22 = arith.mulf %19, %21 : vector<8x32xf32>
      %cst_17 = arith.constant dense<0.000000e+00> : vector<8xf32>
      %23 = vector.multi_reduction <add>, %22, %cst_17 [1] : vector<8x32xf32> to vector<8xf32>
      %24 = vector.shape_cast %23 : vector<8xf32> to vector<8x1xf32>
      %cst_18 = arith.constant 3.200000e+01 : f32
      %25 = vector.broadcast %cst_18 : f32 to vector<8x1xf32>
      %26 = arith.divf %24, %25 : vector<8x1xf32>
      %27 = vector.broadcast %17 : vector<8x1xf32> to vector<8x32xf32>
      %28 = arith.subf %13, %27 : vector<8x32xf32>
      %cst_19 = arith.constant 9.99999974E-6 : f32
      %29 = vector.broadcast %cst_19 : f32 to vector<8x1xf32>
      %30 = arith.addf %26, %29 : vector<8x1xf32>
      %31 = math.rsqrt %30 : vector<8x1xf32>
      %32 = vector.broadcast %31 : vector<8x1xf32> to vector<8x32xf32>
      %33 = arith.mulf %28, %32 : vector<8x32xf32>
      %c0_20 = arith.constant 0 : index
      %c0_21 = arith.constant 0 : index
      %34 = vector.load %arg3[%c0_20, %c0_21] : memref<1x32xf32, #tpu.memory_space<vmem>>, vector<1x32xf32>
      %35 = vector.broadcast %34 : vector<1x32xf32> to vector<8x32xf32>
      %36 = arith.mulf %33, %35 : vector<8x32xf32>
      %c0_22 = arith.constant 0 : index
      %c0_23 = arith.constant 0 : index
      %37 = vector.load %arg4[%c0_22, %c0_23] : memref<1x32xf32, #tpu.memory_space<vmem>>, vector<1x32xf32>
      %38 = vector.broadcast %37 : vector<1x32xf32> to vector<8x32xf32>
      %39 = arith.addf %36, %38 : vector<8x32xf32>
      %40 = arith.truncf %39 : vector<8x32xf32> to vector<8x32xbf16>
      %c0_24 = arith.constant 0 : index
      %c0_25 = arith.constant 0 : index
      %41 = vector.load %arg5[%c0_24, %c0_25] : memref<32x32xbf16, #tpu.memory_space<vmem>>, vector<32x32xbf16>
      %cst_26 = arith.constant dense<0.000000e+00> : vector<8x32xf32>
      %42 = tpu.matmul %40, %41, %cst_26 {dimension_numbers = #tpu.dot_dimension_numbers<[1], [0], [0], [1], [0, 0, 1, 1], [], []>} : vector<8x32xbf16>, vector<32x32xbf16>, vector<8x32xf32> -> vector<8x32xf32>
      %c0_27 = arith.constant 0 : index
      %c0_28 = arith.constant 0 : index
      %43 = vector.load %arg6[%c0_27, %c0_28] : memref<1x32xf32, #tpu.memory_space<vmem>>, vector<1x32xf32>
      %44 = vector.broadcast %43 : vector<1x32xf32> to vector<8x32xf32>
      %45 = arith.addf %42, %44 : vector<8x32xf32>
      %46 = arith.negf %45 : vector<8x32xf32>
      %47 = math.exp %46 : vector<8x32xf32>
      %cst_29 = arith.constant 1.000000e+00 : f32
      %48 = vector.broadcast %cst_29 : f32 to vector<8x32xf32>
      %49 = arith.addf %48, %47 : vector<8x32xf32>
      %50 = arith.divf %48, %49 : vector<8x32xf32>
      %51 = arith.mulf %45, %50 : vector<8x32xf32>
      %52 = arith.truncf %51 : vector<8x32xf32> to vector<8x32xbf16>
      %c0_30 = arith.constant 0 : index
      %c0_31 = arith.constant 0 : index
      %53 = vector.load %arg7[%c0_30, %c0_31] : memref<32x32xbf16, #tpu.memory_space<vmem>>, vector<32x32xbf16>
      %cst_32 = arith.constant dense<0.000000e+00> : vector<8x32xf32>
      %54 = tpu.matmul %52, %53, %cst_32 {dimension_numbers = #tpu.dot_dimension_numbers<[1], [0], [0], [1], [0, 0, 1, 1], [], []>} : vector<8x32xbf16>, vector<32x32xbf16>, vector<8x32xf32> -> vector<8x32xf32>
      %c0_33 = arith.constant 0 : index
      %c0_34 = arith.constant 0 : index
      %55 = vector.load %arg8[%c0_33, %c0_34] : memref<1x32xf32, #tpu.memory_space<vmem>>, vector<1x32xf32>
      %56 = vector.broadcast %55 : vector<1x32xf32> to vector<8x32xf32>
      %57 = arith.addf %54, %56 : vector<8x32xf32>
      %58 = arith.negf %57 : vector<8x32xf32>
      %59 = math.exp %58 : vector<8x32xf32>
      %cst_35 = arith.constant 1.000000e+00 : f32
      %60 = vector.broadcast %cst_35 : f32 to vector<8x32xf32>
      %61 = arith.addf %60, %59 : vector<8x32xf32>
      %62 = arith.divf %60, %61 : vector<8x32xf32>
      %63 = arith.mulf %57, %62 : vector<8x32xf32>
      %c0_36 = arith.constant 0 : index
      %c0_37 = arith.constant 0 : index
      %64 = vector.load %arg9[%c0_36, %c0_37] : memref<1x32xf32, #tpu.memory_space<vmem>>, vector<1x32xf32>
      %65 = vector.broadcast %64 : vector<1x32xf32> to vector<8x32xf32>
      %66 = arith.mulf %63, %65 : vector<8x32xf32>
      %cst_38 = arith.constant dense<0.000000e+00> : vector<8xf32>
      %67 = vector.multi_reduction <add>, %66, %cst_38 [1] : vector<8x32xf32> to vector<8xf32>
      %68 = vector.shape_cast %67 : vector<8xf32> to vector<1x8xf32>
      %c0_39 = arith.constant 0 : index
      %c0_40 = arith.constant 0 : index
      %69 = vector.load %arg10[%c0_39, %c0_40] : memref<1x1xf32, #tpu.memory_space<vmem>>, vector<1x1xf32>
      %70 = vector.broadcast %69 : vector<1x1xf32> to vector<1x8xf32>
      %71 = arith.addf %68, %70 : vector<1x8xf32>
      %c0_41 = arith.constant 0 : index
      %c0_42 = arith.constant 0 : index
      %c0_43 = arith.constant 0 : index
      %72 = vector.load %arg11[%c0_41, %c0_42, %c0_43] : memref<1x1x8xf32, #tpu.memory_space<vmem>>, vector<1x1x8xf32>
      %73 = vector.shape_cast %72 : vector<1x1x8xf32> to vector<1x8xf32>
      %74 = vector.shape_cast %71 : vector<1x8xf32> to vector<1x1x8xf32>
      tpu.vector_store %arg11[%c0_41, %c0_42, %c0_43], %74 {strides = array<i32>} : memref<1x1x8xf32, #tpu.memory_space<vmem>>, vector<1x1x8xf32>,
    } else {
    }
    return
  }
  func.func @transform_0(%arg0: i32, %arg1: i32) -> (i32, i32, i32) {
    %c0_i32 = arith.constant 0 : i32
    %c0_i32_0 = arith.constant 0 : i32
    return %arg0, %arg1, %c0_i32 : i32, i32, i32
  }
  func.func @transform_1(%arg0: i32, %arg1: i32) -> (i32, i32) {
    %c0_i32 = arith.constant 0 : i32
    %c0_i32_0 = arith.constant 0 : i32
    %c0_i32_1 = arith.constant 0 : i32
    return %c0_i32, %c0_i32_0 : i32, i32
  }
  func.func @transform_2(%arg0: i32, %arg1: i32) -> (i32, i32) {
    %c0_i32 = arith.constant 0 : i32
    %c0_i32_0 = arith.constant 0 : i32
    %c0_i32_1 = arith.constant 0 : i32
    return %c0_i32, %c0_i32_0 : i32, i32
  }
  func.func @transform_3(%arg0: i32, %arg1: i32) -> (i32, i32) {
    %c0_i32 = arith.constant 0 : i32
    %c0_i32_0 = arith.constant 0 : i32
    %c0_i32_1 = arith.constant 0 : i32
    return %c0_i32, %c0_i32_0 : i32, i32
  }
  func.func @transform_4(%arg0: i32, %arg1: i32) -> (i32, i32) {
    %c0_i32 = arith.constant 0 : i32
    %c0_i32_0 = arith.constant 0 : i32
    %c0_i32_1 = arith.constant 0 : i32
    return %c0_i32, %c0_i32_0 : i32, i32
  }
  func.func @transform_5(%arg0: i32, %arg1: i32) -> (i32, i32) {
    %c0_i32 = arith.constant 0 : i32
    %c0_i32_0 = arith.constant 0 : i32
    %c0_i32_1 = arith.constant 0 : i32
    return %c0_i32, %c0_i32_0 : i32, i32
  }
  func.func @transform_6(%arg0: i32, %arg1: i32) -> (i32, i32) {
    %c0_i32 = arith.constant 0 : i32
    %c0_i32_0 = arith.constant 0 : i32
    %c0_i32_1 = arith.constant 0 : i32
    return %c0_i32, %c0_i32_0 : i32, i32
  }
  func.func @transform_7(%arg0: i32, %arg1: i32) -> (i32, i32) {
    %c0_i32 = arith.constant 0 : i32
    %c0_i32_0 = arith.constant 0 : i32
    %c0_i32_1 = arith.constant 0 : i32
    return %c0_i32, %c0_i32_0 : i32, i32
  }
  func.func @transform_8(%arg0: i32, %arg1: i32) -> (i32, i32) {
    %c0_i32 = arith.constant 0 : i32
    %c0_i32_0 = arith.constant 0 : i32
    %c0_i32_1 = arith.constant 0 : i32
    return %c0_i32, %c0_i32_0 : i32, i32
  }
  func.func @transform_9(%arg0: i32, %arg1: i32) -> (i32, i32, i32) {
    %c0_i32 = arith.constant 0 : i32
    %c0_i32_0 = arith.constant 0 : i32
    %c0_i32_1 = arith.constant 0 : i32
    return %arg0, %c0_i32, %c0_i32_0 : i32, i32, i32
  }
}

module attributes {stable_mosaic.version = 11 : i64} {
  func.func @mlp_head_kernel(%arg0: i32, %arg1: i32, %arg2: memref<8x8x32xf32, #tpu.memory_space<vmem>>, %arg3: memref<1x32xf32, #tpu.memory_space<vmem>>, %arg4: memref<1x32xf32, #tpu.memory_space<vmem>>, %arg5: memref<32x32xbf16, #tpu.memory_space<vmem>>, %arg6: memref<1x32xf32, #tpu.memory_space<vmem>>, %arg7: memref<32x32xbf16, #tpu.memory_space<vmem>>, %arg8: memref<1x32xf32, #tpu.memory_space<vmem>>, %arg9: memref<1x32xf32, #tpu.memory_space<vmem>>, %arg10: memref<1x1xf32, #tpu.memory_space<vmem>>, %arg11: memref<1x1x8xf32, #tpu.memory_space<vmem>>, %arg12: memref<8x8x32xf32, #tpu.memory_space<vmem>>) attributes {dimension_semantics = [#tpu.dimension_semantics<parallel>, #tpu.dimension_semantics<arbitrary>], iteration_bounds = array<i64: 1, 1>, scalar_prefetch = 0 : i64, scratch_operands = 1 : i64, tpu.core_type = #tpu.core_type<tc>, window_params = [{transform_indices = @transform_0, window_bounds = array<i64: 8, 8, 32>}, {pipeline_mode = #tpu.pipeline_mode<synchronous>, transform_indices = @transform_1, window_bounds = array<i64: 1, 32>}, {pipeline_mode = #tpu.pipeline_mode<synchronous>, transform_indices = @transform_2, window_bounds = array<i64: 1, 32>}, {pipeline_mode = #tpu.pipeline_mode<synchronous>, transform_indices = @transform_3, window_bounds = array<i64: 32, 32>}, {pipeline_mode = #tpu.pipeline_mode<synchronous>, transform_indices = @transform_4, window_bounds = array<i64: 1, 32>}, {pipeline_mode = #tpu.pipeline_mode<synchronous>, transform_indices = @transform_5, window_bounds = array<i64: 32, 32>}, {pipeline_mode = #tpu.pipeline_mode<synchronous>, transform_indices = @transform_6, window_bounds = array<i64: 1, 32>}, {pipeline_mode = #tpu.pipeline_mode<synchronous>, transform_indices = @transform_7, window_bounds = array<i64: 1, 32>}, {pipeline_mode = #tpu.pipeline_mode<synchronous>, transform_indices = @transform_8, window_bounds = array<i64: 1, 1>}, {transform_indices = @transform_9, window_bounds = array<i64: 1, 1, 8>}]} {
    %c0_i32 = arith.constant 0 : i32
    %0 = arith.cmpi eq, %arg1, %c0_i32 : i32
    %1 = arith.extui %0 : i1 to i32
    %c0_i32_0 = arith.constant 0 : i32
    %2 = arith.cmpi ne, %1, %c0_i32_0 : i32
    scf.if %2 {
      %cst = arith.constant 0.000000e+00 : f32
      %10 = vector.broadcast %cst : f32 to vector<8x8x32xf32>
      %c0_11 = arith.constant 0 : index
      %c0_12 = arith.constant 0 : index
      %c0_13 = arith.constant 0 : index
      %11 = vector.load %arg12[%c0_11, %c0_12, %c0_13] : memref<8x8x32xf32, #tpu.memory_space<vmem>>, vector<8x8x32xf32>
      tpu.vector_store %arg12[%c0_11, %c0_12, %c0_13], %10 {strides = array<i32>} : memref<8x8x32xf32, #tpu.memory_space<vmem>>, vector<8x8x32xf32>,
    } else {
    }
    %c0 = arith.constant 0 : index
    %c0_1 = arith.constant 0 : index
    %c0_2 = arith.constant 0 : index
    %3 = vector.load %arg2[%c0, %c0_1, %c0_2] : memref<8x8x32xf32, #tpu.memory_space<vmem>>, vector<8x8x32xf32>
    %c0_3 = arith.constant 0 : index
    %c0_4 = arith.constant 0 : index
    %c0_5 = arith.constant 0 : index
    %4 = vector.load %arg12[%c0_3, %c0_4, %c0_5] : memref<8x8x32xf32, #tpu.memory_space<vmem>>, vector<8x8x32xf32>
    %5 = arith.addf %4, %3 : vector<8x8x32xf32>
    %c0_6 = arith.constant 0 : index
    %c0_7 = arith.constant 0 : index
    %c0_8 = arith.constant 0 : index
    %6 = vector.load %arg12[%c0_6, %c0_7, %c0_8] : memref<8x8x32xf32, #tpu.memory_space<vmem>>, vector<8x8x32xf32>
    tpu.vector_store %arg12[%c0_6, %c0_7, %c0_8], %5 {strides = array<i32>} : memref<8x8x32xf32, #tpu.memory_space<vmem>>, vector<8x8x32xf32>,
    %c0_i32_9 = arith.constant 0 : i32
    %7 = arith.cmpi eq, %arg1, %c0_i32_9 : i32
    %8 = arith.extui %7 : i1 to i32
    %c0_i32_10 = arith.constant 0 : i32
    %9 = arith.cmpi ne, %8, %c0_i32_10 : i32
    scf.if %9 {
      %c0_11 = arith.constant 0 : index
      %c0_12 = arith.constant 0 : index
      %c0_13 = arith.constant 0 : index
      %10 = vector.load %arg12[%c0_11, %c0_12, %c0_13] : memref<8x8x32xf32, #tpu.memory_space<vmem>>, vector<8x8x32xf32>
      %cst = arith.constant dense<0.000000e+00> : vector<8x32xf32>
      %11 = vector.multi_reduction <add>, %10, %cst [1] : vector<8x8x32xf32> to vector<8x32xf32>
      %cst_14 = arith.constant 1.250000e-01 : f32
      %12 = vector.broadcast %cst_14 : f32 to vector<8x32xf32>
      %13 = arith.mulf %11, %12 : vector<8x32xf32>
      %cst_15 = arith.constant dense<0.000000e+00> : vector<8xf32>
      %14 = vector.multi_reduction <add>, %13, %cst_15 [1] : vector<8x32xf32> to vector<8xf32>
      %15 = vector.shape_cast %14 : vector<8xf32> to vector<8x1xf32>
      %cst_16 = arith.constant 3.200000e+01 : f32
      %16 = vector.broadcast %cst_16 : f32 to vector<8x1xf32>
      %17 = arith.divf %15, %16 : vector<8x1xf32>
      %18 = vector.broadcast %17 : vector<8x1xf32> to vector<8x32xf32>
      %19 = arith.subf %13, %18 : vector<8x32xf32>
      %20 = vector.broadcast %17 : vector<8x1xf32> to vector<8x32xf32>
      %21 = arith.subf %13, %20 : vector<8x32xf32>
      %22 = arith.mulf %19, %21 : vector<8x32xf32>
      %cst_17 = arith.constant dense<0.000000e+00> : vector<8xf32>
      %23 = vector.multi_reduction <add>, %22, %cst_17 [1] : vector<8x32xf32> to vector<8xf32>
      %24 = vector.shape_cast %23 : vector<8xf32> to vector<8x1xf32>
      %cst_18 = arith.constant 3.200000e+01 : f32
      %25 = vector.broadcast %cst_18 : f32 to vector<8x1xf32>
      %26 = arith.divf %24, %25 : vector<8x1xf32>
      %27 = vector.broadcast %17 : vector<8x1xf32> to vector<8x32xf32>
      %28 = arith.subf %13, %27 : vector<8x32xf32>
      %cst_19 = arith.constant 9.99999974E-6 : f32
      %29 = vector.broadcast %cst_19 : f32 to vector<8x1xf32>
      %30 = arith.addf %26, %29 : vector<8x1xf32>
      %31 = math.rsqrt %30 : vector<8x1xf32>
      %32 = vector.broadcast %31 : vector<8x1xf32> to vector<8x32xf32>
      %33 = arith.mulf %28, %32 : vector<8x32xf32>
      %c0_20 = arith.constant 0 : index
      %c0_21 = arith.constant 0 : index
      %34 = vector.load %arg3[%c0_20, %c0_21] : memref<1x32xf32, #tpu.memory_space<vmem>>, vector<1x32xf32>
      %35 = vector.broadcast %34 : vector<1x32xf32> to vector<8x32xf32>
      %36 = arith.mulf %33, %35 : vector<8x32xf32>
      %c0_22 = arith.constant 0 : index
      %c0_23 = arith.constant 0 : index
      %37 = vector.load %arg4[%c0_22, %c0_23] : memref<1x32xf32, #tpu.memory_space<vmem>>, vector<1x32xf32>
      %38 = vector.broadcast %37 : vector<1x32xf32> to vector<8x32xf32>
      %39 = arith.addf %36, %38 : vector<8x32xf32>
      %40 = arith.truncf %39 : vector<8x32xf32> to vector<8x32xbf16>
      %c0_24 = arith.constant 0 : index
      %c0_25 = arith.constant 0 : index
      %41 = vector.load %arg5[%c0_24, %c0_25] : memref<32x32xbf16, #tpu.memory_space<vmem>>, vector<32x32xbf16>
      %cst_26 = arith.constant dense<0.000000e+00> : vector<8x32xf32>
      %42 = tpu.matmul %40, %41, %cst_26 {dimension_numbers = #tpu.dot_dimension_numbers<[1], [0], [0], [1], [0, 0, 1, 1], [], []>} : vector<8x32xbf16>, vector<32x32xbf16>, vector<8x32xf32> -> vector<8x32xf32>
      %c0_27 = arith.constant 0 : index
      %c0_28 = arith.constant 0 : index
      %43 = vector.load %arg6[%c0_27, %c0_28] : memref<1x32xf32, #tpu.memory_space<vmem>>, vector<1x32xf32>
      %44 = vector.broadcast %43 : vector<1x32xf32> to vector<8x32xf32>
      %45 = arith.addf %42, %44 : vector<8x32xf32>
      %46 = arith.negf %45 : vector<8x32xf32>
      %47 = math.exp %46 : vector<8x32xf32>
      %cst_29 = arith.constant 1.000000e+00 : f32
      %48 = vector.broadcast %cst_29 : f32 to vector<8x32xf32>
      %49 = arith.addf %48, %47 : vector<8x32xf32>
      %50 = arith.divf %48, %49 : vector<8x32xf32>
      %51 = arith.mulf %45, %50 : vector<8x32xf32>
      %52 = arith.truncf %51 : vector<8x32xf32> to vector<8x32xbf16>
      %c0_30 = arith.constant 0 : index
      %c0_31 = arith.constant 0 : index
      %53 = vector.load %arg7[%c0_30, %c0_31] : memref<32x32xbf16, #tpu.memory_space<vmem>>, vector<32x32xbf16>
      %cst_32 = arith.constant dense<0.000000e+00> : vector<8x32xf32>
      %54 = tpu.matmul %52, %53, %cst_32 {dimension_numbers = #tpu.dot_dimension_numbers<[1], [0], [0], [1], [0, 0, 1, 1], [], []>} : vector<8x32xbf16>, vector<32x32xbf16>, vector<8x32xf32> -> vector<8x32xf32>
      %c0_33 = arith.constant 0 : index
      %c0_34 = arith.constant 0 : index
      %55 = vector.load %arg8[%c0_33, %c0_34] : memref<1x32xf32, #tpu.memory_space<vmem>>, vector<1x32xf32>
      %56 = vector.broadcast %55 : vector<1x32xf32> to vector<8x32xf32>
      %57 = arith.addf %54, %56 : vector<8x32xf32>
      %58 = arith.negf %57 : vector<8x32xf32>
      %59 = math.exp %58 : vector<8x32xf32>
      %cst_35 = arith.constant 1.000000e+00 : f32
      %60 = vector.broadcast %cst_35 : f32 to vector<8x32xf32>
      %61 = arith.addf %60, %59 : vector<8x32xf32>
      %62 = arith.divf %60, %61 : vector<8x32xf32>
      %63 = arith.mulf %57, %62 : vector<8x32xf32>
      %c0_36 = arith.constant 0 : index
      %c0_37 = arith.constant 0 : index
      %64 = vector.load %arg9[%c0_36, %c0_37] : memref<1x32xf32, #tpu.memory_space<vmem>>, vector<1x32xf32>
      %65 = vector.broadcast %64 : vector<1x32xf32> to vector<8x32xf32>
      %66 = arith.mulf %63, %65 : vector<8x32xf32>
      %cst_38 = arith.constant dense<0.000000e+00> : vector<8xf32>
      %67 = vector.multi_reduction <add>, %66, %cst_38 [1] : vector<8x32xf32> to vector<8xf32>
      %68 = vector.shape_cast %67 : vector<8xf32> to vector<1x8xf32>
      %c0_39 = arith.constant 0 : index
      %c0_40 = arith.constant 0 : index
      %69 = vector.load %arg10[%c0_39, %c0_40] : memref<1x1xf32, #tpu.memory_space<vmem>>, vector<1x1xf32>
      %70 = vector.broadcast %69 : vector<1x1xf32> to vector<1x8xf32>
      %71 = arith.addf %68, %70 : vector<1x8xf32>
      %c0_41 = arith.constant 0 : index
      %c0_42 = arith.constant 0 : index
      %c0_43 = arith.constant 0 : index
      %72 = vector.load %arg11[%c0_41, %c0_42, %c0_43] : memref<1x1x8xf32, #tpu.memory_space<vmem>>, vector<1x1x8xf32>
      %73 = vector.shape_cast %72 : vector<1x1x8xf32> to vector<1x8xf32>
      %74 = vector.shape_cast %71 : vector<1x8xf32> to vector<1x1x8xf32>
      tpu.vector_store %arg11[%c0_41, %c0_42, %c0_43], %74 {strides = array<i32>} : memref<1x1x8xf32, #tpu.memory_space<vmem>>, vector<1x1x8xf32>,
    } else {
    }
    return
  }
  func.func @transform_0(%arg0: i32, %arg1: i32) -> (i32, i32, i32) {
    %c0_i32 = arith.constant 0 : i32
    %c0_i32_0 = arith.constant 0 : i32
    return %arg0, %arg1, %c0_i32 : i32, i32, i32
  }
  func.func @transform_1(%arg0: i32, %arg1: i32) -> (i32, i32) {
    %c0_i32 = arith.constant 0 : i32
    %c0_i32_0 = arith.constant 0 : i32
    %c0_i32_1 = arith.constant 0 : i32
    return %c0_i32, %c0_i32_0 : i32, i32
  }
  func.func @transform_2(%arg0: i32, %arg1: i32) -> (i32, i32) {
    %c0_i32 = arith.constant 0 : i32
    %c0_i32_0 = arith.constant 0 : i32
    %c0_i32_1 = arith.constant 0 : i32
    return %c0_i32, %c0_i32_0 : i32, i32
  }
  func.func @transform_3(%arg0: i32, %arg1: i32) -> (i32, i32) {
    %c0_i32 = arith.constant 0 : i32
    %c0_i32_0 = arith.constant 0 : i32
    %c0_i32_1 = arith.constant 0 : i32
    return %c0_i32, %c0_i32_0 : i32, i32
  }
  func.func @transform_4(%arg0: i32, %arg1: i32) -> (i32, i32) {
    %c0_i32 = arith.constant 0 : i32
    %c0_i32_0 = arith.constant 0 : i32
    %c0_i32_1 = arith.constant 0 : i32
    return %c0_i32, %c0_i32_0 : i32, i32
  }
  func.func @transform_5(%arg0: i32, %arg1: i32) -> (i32, i32) {
    %c0_i32 = arith.constant 0 : i32
    %c0_i32_0 = arith.constant 0 : i32
    %c0_i32_1 = arith.constant 0 : i32
    return %c0_i32, %c0_i32_0 : i32, i32
  }
  func.func @transform_6(%arg0: i32, %arg1: i32) -> (i32, i32) {
    %c0_i32 = arith.constant 0 : i32
    %c0_i32_0 = arith.constant 0 : i32
    %c0_i32_1 = arith.constant 0 : i32
    return %c0_i32, %c0_i32_0 : i32, i32
  }
  func.func @transform_7(%arg0: i32, %arg1: i32) -> (i32, i32) {
    %c0_i32 = arith.constant 0 : i32
    %c0_i32_0 = arith.constant 0 : i32
    %c0_i32_1 = arith.constant 0 : i32
    return %c0_i32, %c0_i32_0 : i32, i32
  }
  func.func @transform_8(%arg0: i32, %arg1: i32) -> (i32, i32) {
    %c0_i32 = arith.constant 0 : i32
    %c0_i32_0 = arith.constant 0 : i32
    %c0_i32_1 = arith.constant 0 : i32
    return %c0_i32, %c0_i32_0 : i32, i32
  }
  func.func @transform_9(%arg0: i32, %arg1: i32) -> (i32, i32, i32) {
    %c0_i32 = arith.constant 0 : i32
    %c0_i32_0 = arith.constant 0 : i32
    %c0_i32_1 = arith.constant 0 : i32
    return %arg0, %c0_i32, %c0_i32_0 : i32, i32, i32
  }
}

</mosaic_0001>

<llo_original>
// kernel: tpu_custom_call.1
$region0: #{tpu_custom_call.1}
  #allocation0 [shape = 'u32[]', space=smem, size = 0x4, offset = 0x4, fixed_abs, tag = 'smem constant byte address 0x4 - core index']
  #allocation1 [shape = 'u32[72,128]{1,0:T(1,128)}', space=vmem, size = 0x9000, scoped, tag = 'internal scratch']
  #allocation2 [shape = 'f32[8,8,32]{2,1,0:T(8,128)}', space=vmem, size = 0x8000, scoped, tag = 'scratch operand']
  #allocation3 [shape = 'f32[1,1]{1,0:T(1,128)S(1)}', space=vmem, size = 0x200, scoped, tag = 'scoped memory for tpu_custom_call.1']
  %s0 = inlined_call_operand.hbm [shape: f32[8,8,32], index: 0, kind: input, shape index: {}]
  %s1 = inlined_call_operand.vmem [shape: f32[1,32], index: 1, kind: input, shape index: {}]
  %s2 = inlined_call_operand.vmem [shape: f32[1,32], index: 2, kind: input, shape index: {}]
  %s3 = inlined_call_operand.hbm [shape: bf16[32,32], index: 3, kind: input, shape index: {}]
  %s4 = inlined_call_operand.vmem [shape: f32[1,32], index: 4, kind: input, shape index: {}]
  %s5 = inlined_call_operand.hbm [shape: bf16[32,32], index: 5, kind: input, shape index: {}]
  %s6 = inlined_call_operand.vmem [shape: f32[1,32], index: 6, kind: input, shape index: {}]
  %s7 = inlined_call_operand.vmem [shape: f32[1,32], index: 7, kind: input, shape index: {}]
  %s8 = inlined_call_operand.<no memory space> [shape: f32[1,1], index: 8, kind: input, shape index: {}]
  %s9 = inlined_call_operand.hbm [shape: f32[1,1,8], index: 9, kind: output, shape index: {}]
  %s10 = sld [smem:[#allocation0]]
  $region66: #{tpu_custom_call.1} parent=0
    _
  %s12 = ssub.s32 1, %s10
  %s13 = scalar_select 0, %s12, %s10
  %v14 = vstv %s8
  %15 = vst [vmem:[#allocation3] sm:$0x1] %v14
  $region1: #{tpu_custom_call.1} parent=0
    #allocation4 [shape = 'u8[32768]{0}', space=vmem, size = 0x8000, scoped, tag = 'input window, operand 0, single buffered']
    #allocation5 [shape = 's32[1]{0}', space=sflag, size = 0x4, scoped, tag = 'scoped memory for tpu_custom_call.1']
    #allocation6 [shape = 's32[1]{0}', space=sflag, size = 0x4, scoped, tag = 'scoped memory for tpu_custom_call.1']
    #allocation7 [shape = 'u8[8192]{0}', space=vmem, size = 0x2000, scoped, tag = 'input window, operand 3, single buffered']
    #allocation8 [shape = 's32[1]{0}', space=sflag, size = 0x4, scoped, tag = 'scoped memory for tpu_custom_call.1']
    #allocation9 [shape = 'u8[8192]{0}', space=vmem, size = 0x2000, scoped, tag = 'input window, operand 5, single buffered']
    #allocation10 [shape = 'u8[512]{0}', space=vmem, size = 0x400, scoped, tag = 'output window, operand 0, single buffered']
    %16 = vsyncpa [#allocation5], 0
    %17 = vsyncpa [#allocation8], 0
    %18 = vsyncpa [#allocation6], 0
    // Predicated region
    $region2: #{tpu_custom_call.1} parent=1 // pred_check
      _
    $region3: #{tpu_custom_call.1} parent=1 // pred_check_branch
      %20 = sbr.rel (0) target = $region5
    $region4: #{tpu_custom_call.1} parent=1 // pred_region
      %22 = vsyncadd [#allocation5], 0
      %s23 = sshll.u32 %s0, 4
      %s24 = int_to_ptr.hbm [resolvable:$true] %s23
      %s25 = sshll.u32 [#allocation4], 4
      %s26 = int_to_ptr.vmem [resolvable:$true] %s25
      %31 = dma.hbm_to_vmem [thread:$0]  %s24, 1024, %s26, [#allocation5], 128, 128, 8
    $region5: #{tpu_custom_call.1} parent=1 // pred_fallthru
      _
    // Predicated region
    $region6: #{tpu_custom_call.1} parent=1 // pred_check
      _
    $region7: #{tpu_custom_call.1} parent=1 // pred_check_branch
      %33 = sbr.rel (0) target = $region9
    $region8: #{tpu_custom_call.1} parent=1 // pred_region
      _
    $region9: #{tpu_custom_call.1} parent=1 // pred_fallthru
      _
    // Predicated region
    $region10: #{tpu_custom_call.1} parent=1 // pred_check
      _
    $region11: #{tpu_custom_call.1} parent=1 // pred_check_branch
      %35 = sbr.rel (0) target = $region13
    $region12: #{tpu_custom_call.1} parent=1 // pred_region
      _
    $region13: #{tpu_custom_call.1} parent=1 // pred_fallthru
      _
    // Predicated region
    $region14: #{tpu_custom_call.1} parent=1 // pred_check
      _
    $region15: #{tpu_custom_call.1} parent=1 // pred_check_branch
      %37 = sbr.rel (0) target = $region17
    $region16: #{tpu_custom_call.1} parent=1 // pred_region
      %39 = vsyncadd [#allocation8], 0
      %s40 = sshll.u32 %s3, 4
      %s41 = int_to_ptr.hbm [resolvable:$true] %s40
      %s42 = sshll.u32 [#allocation7], 4
      %s43 = int_to_ptr.vmem [resolvable:$true] %s42
      %48 = dma.hbm_to_vmem [thread:$0]  %s41, 256, %s43, [#allocation8], 64, 64, 4
    $region17: #{tpu_custom_call.1} parent=1 // pred_fallthru
      _
    // Predicated region
    $region18: #{tpu_custom_call.1} parent=1 // pred_check
      _
    $region19: #{tpu_custom_call.1} parent=1 // pred_check_branch
      %50 = sbr.rel (0) target = $region21
    $region20: #{tpu_custom_call.1} parent=1 // pred_region
      _
    $region21: #{tpu_custom_call.1} parent=1 // pred_fallthru
      _
    // Predicated region
    $region22: #{tpu_custom_call.1} parent=1 // pred_check
      _
    $region23: #{tpu_custom_call.1} parent=1 // pred_check_branch
      %52 = sbr.rel (0) target = $region25
    $region24: #{tpu_custom_call.1} parent=1 // pred_region
      %54 = vsyncadd [#allocation8], 0
      %s55 = sshll.u32 %s5, 4
      %s56 = int_to_ptr.hbm [resolvable:$true] %s55
      %s57 = sshll.u32 [#allocation9], 4
      %s58 = int_to_ptr.vmem [resolvable:$true] %s57
      %63 = dma.hbm_to_vmem [thread:$0]  %s56, 256, %s58, [#allocation8], 64, 64, 4
    $region25: #{tpu_custom_call.1} parent=1 // pred_fallthru
      _
    // Predicated region
    $region26: #{tpu_custom_call.1} parent=1 // pred_check
      _
    $region27: #{tpu_custom_call.1} parent=1 // pred_check_branch
      %65 = sbr.rel (0) target = $region29
    $region28: #{tpu_custom_call.1} parent=1 // pred_region
      _
    $region29: #{tpu_custom_call.1} parent=1 // pred_fallthru
      _
    // Predicated region
    $region30: #{tpu_custom_call.1} parent=1 // pred_check
      _
    $region31: #{tpu_custom_call.1} parent=1 // pred_check_branch
      %67 = sbr.rel (0) target = $region33
    $region32: #{tpu_custom_call.1} parent=1 // pred_region
      _
    $region33: #{tpu_custom_call.1} parent=1 // pred_fallthru
      _
    // Predicated region
    $region34: #{tpu_custom_call.1} parent=1 // pred_check
      _
    $region35: #{tpu_custom_call.1} parent=1 // pred_check_branch
      %69 = sbr.rel (0) target = $region37
    $region36: #{tpu_custom_call.1} parent=1 // pred_region
      _
    $region37: #{tpu_custom_call.1} parent=1 // pred_fallthru
      _
    // Predicated region
    $region38: #{tpu_custom_call.1} parent=1 // pred_check
      _
    $region39: #{tpu_custom_call.1} parent=1 // pred_check_branch
      %71 = sbr.rel (0) target = $region41
    $region40: #{tpu_custom_call.1} parent=1 // pred_region
      %73 = dma.done [#allocation5], 1024
    $region41: #{tpu_custom_call.1} parent=1 // pred_fallthru
      _
    // Predicated region
    $region42: #{tpu_custom_call.1} parent=1 // pred_check
      _
    $region43: #{tpu_custom_call.1} parent=1 // pred_check_branch
      %75 = sbr.rel (0) target = $region45
    $region44: #{tpu_custom_call.1} parent=1 // pred_region
      %77 = dma.done [#allocation8], 256
    $region45: #{tpu_custom_call.1} parent=1 // pred_fallthru
      _
    // Predicated region
    $region46: #{tpu_custom_call.1} parent=1 // pred_check
      _
    $region47: #{tpu_custom_call.1} parent=1 // pred_check_branch
      %79 = sbr.rel (0) target = $region49
    $region48: #{tpu_custom_call.1} parent=1 // pred_region
      %81 = dma.done [#allocation8], 256
    $region49: #{tpu_custom_call.1} parent=1 // pred_fallthru
      _
    %p83 = scmp.eq.s32.totalorder 0, 0
    // Predicated region
    $region50: #{tpu_custom_call.1} parent=1 // pred_check
      %p84 = pneg %p83
    $region51: #{tpu_custom_call.1} parent=1 // pred_check_branch
      %86 = sbr.rel (%p84) target = $region53
    $region52: #{tpu_custom_call.1} parent=1 // pred_region
      %vm87 = vcmask 261120
      %88 = vst.msk [vmem:[#allocation2] sm:$0xff] %vm87, 0.0
      %89 = vst.msk [vmem:[#allocation2 + $0x8] sm:$0xff] %vm87, 0.0
      %90 = vst.msk [vmem:[#allocation2 + $0x10] sm:$0xff] %vm87, 0.0
      %91 = vst.msk [vmem:[#allocation2 + $0x18] sm:$0xff] %vm87, 0.0
      %92 = vst.msk [vmem:[#allocation2 + $0x20] sm:$0xff] %vm87, 0.0
      %93 = vst.msk [vmem:[#allocation2 + $0x28] sm:$0xff] %vm87, 0.0
      %94 = vst.msk [vmem:[#allocation2 + $0x30] sm:$0xff] %vm87, 0.0
      %95 = vst.msk [vmem:[#allocation2 + $0x38] sm:$0xff] %vm87, 0.0
    $region53: #{tpu_custom_call.1} parent=1 // pred_fallthru
      _
    %v96 = vld [vmem:[#allocation4] sm:$0xff]
    %v97 = vld [vmem:[#allocation4 + $0x8] sm:$0xff]
    %v98 = vld [vmem:[#allocation4 + $0x10] sm:$0xff]
    %v99 = vld [vmem:[#allocation4 + $0x18] sm:$0xff]
    %v100 = vld [vmem:[#allocation4 + $0x20] sm:$0xff]
    %v101 = vld [vmem:[#allocation4 + $0x28] sm:$0xff]
    %v102 = vld [vmem:[#allocation4 + $0x30] sm:$0xff]
    %v103 = vld [vmem:[#allocation4 + $0x38] sm:$0xff]
    %v104 = vld [vmem:[#allocation2] sm:$0xff]
    %v105 = vld [vmem:[#allocation2 + $0x8] sm:$0xff]
    %v106 = vld [vmem:[#allocation2 + $0x10] sm:$0xff]
    %v107 = vld [vmem:[#allocation2 + $0x18] sm:$0xff]
    %v108 = vld [vmem:[#allocation2 + $0x20] sm:$0xff]
    %v109 = vld [vmem:[#allocation2 + $0x28] sm:$0xff]
    %v110 = vld [vmem:[#allocation2 + $0x30] sm:$0xff]
    %v111 = vld [vmem:[#allocation2 + $0x38] sm:$0xff]
    %v112 = vadd.f32 %v104, %v96
    %v113 = vadd.f32 %v105, %v97
    %v114 = vadd.f32 %v106, %v98
    %v115 = vadd.f32 %v107, %v99
    %v116 = vadd.f32 %v108, %v100
    %v117 = vadd.f32 %v109, %v101
    %v118 = vadd.f32 %v110, %v102
    %v119 = vadd.f32 %v111, %v103
    %vm120 = vcmask 261120
    %121 = vst.msk [vmem:[#allocation2] sm:$0xff] %vm120, %v112
    %122 = vst.msk [vmem:[#allocation2 + $0x8] sm:$0xff] %vm120, %v113
    %123 = vst.msk [vmem:[#allocation2 + $0x10] sm:$0xff] %vm120, %v114
    %124 = vst.msk [vmem:[#allocation2 + $0x18] sm:$0xff] %vm120, %v115
    %125 = vst.msk [vmem:[#allocation2 + $0x20] sm:$0xff] %vm120, %v116
    %126 = vst.msk [vmem:[#allocation2 + $0x28] sm:$0xff] %vm120, %v117
    %127 = vst.msk [vmem:[#allocation2 + $0x30] sm:$0xff] %vm120, %v118
    %128 = vst.msk [vmem:[#allocation2 + $0x38] sm:$0xff] %vm120, %v119
    // Predicated region
    $region54: #{tpu_custom_call.1} parent=1 // pred_check
      %p129 = pneg %p83
    $region55: #{tpu_custom_call.1} parent=1 // pred_check_branch
      %131 = sbr.rel (%p129) target = $region57
    $region56: #{tpu_custom_call.1} parent=1 // pred_region
      %v132 = vld [vmem:[#allocation2] sm:$0xff]
      %v133 = vld [vmem:[#allocation2 + $0x8] sm:$0xff]
      %v134 = vld [vmem:[#allocation2 + $0x10] sm:$0xff]
      %v135 = vld [vmem:[#allocation2 + $0x18] sm:$0xff]
      %v136 = vld [vmem:[#allocation2 + $0x20] sm:$0xff]
      %v137 = vld [vmem:[#allocation2 + $0x28] sm:$0xff]
      %v138 = vld [vmem:[#allocation2 + $0x30] sm:$0xff]
      %v139 = vld [vmem:[#allocation2 + $0x38] sm:$0xff]
      %v140 = vsel %vm120, %v132, 0.0
      %v141 = vrot.slane %v140, 4
      %v142 = vadd.f32 %v140, %v141
      %v143 = vrot.slane %v142, 2
      %v144 = vadd.f32 %v142, %v143
      %v145 = vrot.slane %v144, 1
      %v146 = vadd.f32 %v144, %v145
      %v147 = vsel %vm120, %v133, 0.0
      %v148 = vrot.slane %v147, 4
      %v149 = vadd.f32 %v147, %v148
      %v150 = vrot.slane %v149, 2
      %v151 = vadd.f32 %v149, %v150
      %v152 = vrot.slane %v151, 1
      %v153 = vadd.f32 %v151, %v152
      %v154 = vsel %vm120, %v134, 0.0
      %v155 = vrot.slane %v154, 4
      %v156 = vadd.f32 %v154, %v155
      %v157 = vrot.slane %v156, 2
      %v158 = vadd.f32 %v156, %v157
      %v159 = vrot.slane %v158, 1
      %v160 = vadd.f32 %v158, %v159
      %v161 = vsel %vm120, %v135, 0.0
      %v162 = vrot.slane %v161, 4
      %v163 = vadd.f32 %v161, %v162
      %v164 = vrot.slane %v163, 2
      %v165 = vadd.f32 %v163, %v164
      %v166 = vrot.slane %v165, 1
      %v167 = vadd.f32 %v165, %v166
      %v168 = vsel %vm120, %v136, 0.0
      %v169 = vrot.slane %v168, 4
      %v170 = vadd.f32 %v168, %v169
      %v171 = vrot.slane %v170, 2
      %v172 = vadd.f32 %v170, %v171
      %v173 = vrot.slane %v172, 1
      %v174 = vadd.f32 %v172, %v173
      %v175 = vsel %vm120, %v137, 0.0
      %v176 = vrot.slane %v175, 4
      %v177 = vadd.f32 %v175, %v176
      %v178 = vrot.slane %v177, 2
      %v179 = vadd.f32 %v177, %v178
      %v180 = vrot.slane %v179, 1
      %v181 = vadd.f32 %v179, %v180
      %v182 = vsel %vm120, %v138, 0.0
      %v183 = vrot.slane %v182, 4
      %v184 = vadd.f32 %v182, %v183
      %v185 = vrot.slane %v184, 2
      %v186 = vadd.f32 %v184, %v185
      %v187 = vrot.slane %v186, 1
      %v188 = vadd.f32 %v186, %v187
      %v189 = vsel %vm120, %v139, 0.0
      %v190 = vrot.slane %v189, 4
      %v191 = vadd.f32 %v189, %v190
      %v192 = vrot.slane %v191, 2
      %v193 = vadd.f32 %v191, %v192
      %v194 = vrot.slane %v193, 1
      %v195 = vadd.f32 %v193, %v194
      %v196 = vmul.f32 %v146, 0.125
      %v197 = vmul.f32 %v153, 0.125
      %v198 = vmul.f32 %v160, 0.125
      %v199 = vmul.f32 %v167, 0.125
      %v200 = vmul.f32 %v174, 0.125
      %v201 = vmul.f32 %v181, 0.125
      %v202 = vmul.f32 %v188, 0.125
      %v203 = vmul.f32 %v195, 0.125
      %vm212 = vcmask 1041409
      %v213 = vsel %vm212, %v197, %v196
      %vm214 = vcmask 1042434
      %v215 = vsel %vm214, %v198, %v213
      %vm216 = vcmask 1043459
      %v217 = vsel %vm216, %v199, %v215
      %vm218 = vcmask 1044484
      %v219 = vsel %vm218, %v200, %v217
      %vm220 = vcmask 1045509
      %v221 = vsel %vm220, %v201, %v219
      %vm222 = vcmask 1046534
      %v223 = vsel %vm222, %v202, %v221
      %vm224 = vcmask 1047559
      %v225 = vsel %vm224, %v203, %v223
      %v227 = vsel %vm120, %v225, 0.0
      %228 = vadd.xlane.f32.xlu0 %v227
      %v229 = vpop.xlane.xlu0 %228
      %v230 = vrcp.pop 32.0
      %v231 = vmul.f32 32.0, %v230
      %v232 = vsub.f32 1.0, %v231
      %v233 = vmul.f32 %v230, %v232
      %v234 = vadd.f32 %v230, %v233
      %vm235 = vweird.f32 %v230
      %v236 = vsel %vm235, %v230, %v234
      %v237 = vmul.f32 %v229, %v236
      %v239 = vrot.slane %v237, 1
      %v240 = vrot.slane %v237, 2
      %v241 = vrot.slane %v237, 3
      %v242 = vrot.slane %v237, 4
      %v243 = vrot.slane %v237, 5
      %v244 = vrot.slane %v237, 6
      %v245 = vrot.slane %v237, 7
      %v254 = vsub.f32 %v196, %v237
      %v255 = vsub.f32 %v197, %v239
      %v256 = vsub.f32 %v198, %v240
      %v257 = vsub.f32 %v199, %v241
      %v258 = vsub.f32 %v200, %v242
      %v259 = vsub.f32 %v201, %v243
      %v260 = vsub.f32 %v202, %v244
      %v261 = vsub.f32 %v203, %v245
      %v262 = vmul.f32 %v254, %v254
      %v263 = vmul.f32 %v255, %v255
      %v264 = vmul.f32 %v256, %v256
      %v265 = vmul.f32 %v257, %v257
      %v266 = vmul.f32 %v258, %v258
      %v267 = vmul.f32 %v259, %v259
      %v268 = vmul.f32 %v260, %v260
      %v269 = vmul.f32 %v261, %v261
      %v278 = vrot.slane %v263, 7
      %v279 = vsel %vm212, %v278, %v262
      %v280 = vrot.slane %v264, 6
      %v281 = vsel %vm214, %v280, %v279
      %v282 = vrot.slane %v265, 5
      %v283 = vsel %vm216, %v282, %v281
      %v284 = vrot.slane %v266, 4
      %v285 = vsel %vm218, %v284, %v283
      %v286 = vrot.slane %v267, 3
      %v287 = vsel %vm220, %v286, %v285
      %v288 = vrot.slane %v268, 2
      %v289 = vsel %vm222, %v288, %v287
      %v290 = vrot.slane %v269, 1
      %v291 = vsel %vm224, %v290, %v289
      %v293 = vsel %vm120, %v291, 0.0
      %294 = vadd.xlane.f32.xlu0 %v293
      %v295 = vpop.xlane.xlu0 %294
      %v296 = vmul.f32 %v295, %v236
      %v297 = vadd.f32 %v296, 1e-05
      %v298 = vrsqrt.pop %v297
      %v299 = vmul.f32 %v298, %v297
      %v300 = vmul.f32 %v299, %v298
      %v301 = vmul.f32 0.5, %v300
      %v302 = vsub.f32 1.5, %v301
      %v303 = vmul.f32 %v298, %v302
      %vm304 = vweird.f32 %v297
      %vm305 = vweird.f32 %v298
      %vm306 = vmor %vm304, %vm305
      %v307 = vsel %vm306, %v298, %v303
      %v309 = vrot.slane %v307, 1
      %v310 = vrot.slane %v307, 2
      %v311 = vrot.slane %v307, 3
      %v312 = vrot.slane %v307, 4
      %v313 = vrot.slane %v307, 5
      %v314 = vrot.slane %v307, 6
      %v315 = vrot.slane %v307, 7
      %v324 = vmul.f32 %v254, %v307
      %v325 = vmul.f32 %v255, %v309
      %v326 = vmul.f32 %v256, %v310
      %v327 = vmul.f32 %v257, %v311
      %v328 = vmul.f32 %v258, %v312
      %v329 = vmul.f32 %v259, %v313
      %v330 = vmul.f32 %v260, %v314
      %v331 = vmul.f32 %v261, %v315
      %v332 = vld [vmem:[%s1] sm:$0x1]
      %v334 = vperm.slane %v332, 0
      %v336 = vmul.f32 %v324, %v334
      %v337 = vmul.f32 %v325, %v334
      %v338 = vmul.f32 %v326, %v334
      %v339 = vmul.f32 %v327, %v334
      %v340 = vmul.f32 %v328, %v334
      %v341 = vmul.f32 %v329, %v334
      %v342 = vmul.f32 %v330, %v334
      %v343 = vmul.f32 %v331, %v334
      %v344 = vld [vmem:[%s2] sm:$0x1]
      %v346 = vperm.slane %v344, 0
      %v348 = vadd.f32 %v336, %v346
      %v349 = vadd.f32 %v337, %v346
      %v350 = vadd.f32 %v338, %v346
      %v351 = vadd.f32 %v339, %v346
      %v352 = vadd.f32 %v340, %v346
      %v353 = vadd.f32 %v341, %v346
      %v354 = vadd.f32 %v342, %v346
      %v355 = vadd.f32 %v343, %v346
      %v356 = vpack.c.bf16 %v348, %v348
      %v357 = vpack.c.bf16 %v349, %v349
      %v358 = vpack.c.bf16 %v350, %v350
      %v359 = vpack.c.bf16 %v351, %v351
      %v360 = vpack.c.bf16 %v352, %v352
      %v361 = vpack.c.bf16 %v353, %v353
      %v362 = vpack.c.bf16 %v354, %v354
      %v363 = vpack.c.bf16 %v355, %v355
      %v364 = vld [vmem:[#allocation7] sm:$0xf]
      %v365 = vld [vmem:[#allocation7 + $0x4] sm:$0xf]
      %v366 = vld [vmem:[#allocation7 + $0x8] sm:$0xf]
      %v367 = vld [vmem:[#allocation7 + $0xc] sm:$0xf]
      %v368 = vld [vmem:[%s4] sm:$0x1]
      %v370 = vperm.slane %v368, 0
      %v380 = vunpack.c.l.b16 %v356
      %v381 = vunpack.c.l.b16 %v357
      %v382 = vunpack.c.l.b16 %v358
      %v383 = vunpack.c.l.b16 %v359
      %v384 = vunpack.c.l.b16 %v360
      %v385 = vunpack.c.l.b16 %v361
      %v386 = vunpack.c.l.b16 %v362
      %v387 = vunpack.c.l.b16 %v363
      %v388 = vrot.slane %v381, 7
      %v389 = vsel %vm212, %v388, %v380
      %v390 = vrot.slane %v382, 6
      %v391 = vsel %vm214, %v390, %v389
      %v392 = vrot.slane %v383, 5
      %v393 = vsel %vm216, %v392, %v391
      %v394 = vrot.slane %v384, 4
      %v395 = vsel %vm218, %v394, %v393
      %v396 = vrot.slane %v385, 3
      %v397 = vsel %vm220, %v396, %v395
      %v398 = vrot.slane %v386, 2
      %v399 = vsel %vm222, %v398, %v397
      %v400 = vrot.slane %v387, 1
      %v401 = vsel %vm224, %v400, %v399
      %v402 = vpack.c.b16 %v401, %v401
      %v407 = vunpack.c.l.b16 %v364
      %v408 = vunpack.c.l.b16 %v365
      %v409 = vunpack.c.l.b16 %v366
      %v410 = vunpack.c.l.b16 %v367
      %v411 = vpack.c.b16 %v408, %v407
      %v412 = vpack.c.b16 %v410, %v409
      %v416 = vsel %vm120, %v402, 0
      %418 = vmatpush.bf16.msra.mxu0 0
      %419 = vmatpush.bf16.msra.mxu0 0
      %420 = vmatpush.bf16.msra.mxu0 0
      %421 = vmatpush.bf16.msra.mxu0 0
      %422 = vmatpush.bf16.msra.mxu0 0
      %423 = vmatpush.bf16.msra.mxu0 0
      %424 = vmatpush.bf16.msra.mxu0 %v412
      %425 = vmatpush.bf16.msra.mxu0 %v411
      %426 = vmatmul.bf16.gmra.mxu0 %v416
      %v427 = vpop.f32.mrf.mxu0
      %v428 = vadd.f32 %v370, %v427
      %v429 = vpop.f32.mrf.mxu0
      %430 = vdwg.mxu0
      %v431 = vxor.u32 %v428, 2147483648
      %v432 = vmul.f32 %v431, 1.442695
      %v433 = vpow.pop %v432
      %v434 = vadd.f32 %v433, 1.0
      %v435 = vrcp.pop %v434
      %v436 = vmul.f32 %v434, %v435
      %v437 = vsub.f32 1.0, %v436
      %v438 = vmul.f32 %v435, %v437
      %v439 = vadd.f32 %v435, %v438
      %vm440 = vweird.f32 %v434
      %vm441 = vweird.f32 %v435
      %vm442 = vmor %vm440, %vm441
      %v443 = vsel %vm442, %v435, %v439
      %v444 = vand.u32 2147483647, %v434
      %vm445 = vcmp.eq.f32.partialorder %v444, 8.507059e+37
      %v446 = vand.u32 %v434, 2147483648
      %v447 = vor.u32 1.1754944e-38, %v446
      %v448 = vsel %vm445, %v447, %v443
      %v449 = vmul.f32 1.0, %v448
      %v450 = vmul.f32 %v428, %v449
      %v451 = vpack.c.bf16 %v450, %v450
      %v452 = vld [vmem:[#allocation9] sm:$0xf]
      %v453 = vld [vmem:[#allocation9 + $0x4] sm:$0xf]
      %v454 = vld [vmem:[#allocation9 + $0x8] sm:$0xf]
      %v455 = vld [vmem:[#allocation9 + $0xc] sm:$0xf]
      %v456 = vld [vmem:[%s6] sm:$0x1]
      %v458 = vperm.slane %v456, 0
      %v464 = vunpack.c.l.b16 %v452
      %v465 = vunpack.c.l.b16 %v453
      %v466 = vunpack.c.l.b16 %v454
      %v467 = vunpack.c.l.b16 %v455
      %v468 = vpack.c.b16 %v465, %v464
      %v469 = vpack.c.b16 %v467, %v466
      %v473 = vsel %vm120, %v451, 0
      %475 = vmatpush.bf16.msra.mxu0 0
      %476 = vmatpush.bf16.msra.mxu0 0
      %477 = vmatpush.bf16.msra.mxu0 0
      %478 = vmatpush.bf16.msra.mxu0 0
      %479 = vmatpush.bf16.msra.mxu0 0
      %480 = vmatpush.bf16.msra.mxu0 0
      %481 = vmatpush.bf16.msra.mxu0 %v469
      %482 = vmatpush.bf16.msra.mxu0 %v468
      %483 = vmatmul.bf16.gmra.mxu0 %v473
      %v484 = vpop.f32.mrf.mxu0
      %v485 = vadd.f32 %v458, %v484
      %v486 = vpop.f32.mrf.mxu0
      %487 = vdwg.mxu0
      %v488 = vxor.u32 %v485, 2147483648
      %v489 = vmul.f32 %v488, 1.442695
      %v490 = vpow.pop %v489
      %v491 = vadd.f32 %v490, 1.0
      %v492 = vrcp.pop %v491
      %v493 = vmul.f32 %v491, %v492
      %v494 = vsub.f32 1.0, %v493
      %v495 = vmul.f32 %v492, %v494
      %v496 = vadd.f32 %v492, %v495
      %vm497 = vweird.f32 %v491
      %vm498 = vweird.f32 %v492
      %vm499 = vmor %vm497, %vm498
      %v500 = vsel %vm499, %v492, %v496
      %v501 = vand.u32 2147483647, %v491
      %vm502 = vcmp.eq.f32.partialorder %v501, 8.507059e+37
      %v503 = vand.u32 %v491, 2147483648
      %v504 = vor.u32 1.1754944e-38, %v503
      %v505 = vsel %vm502, %v504, %v500
      %v506 = vmul.f32 1.0, %v505
      %v507 = vmul.f32 %v485, %v506
      %v508 = vld [vmem:[%s7] sm:$0x1]
      %v510 = vperm.slane %v508, 0
      %v512 = vmul.f32 %v507, %v510
      %v513 = vsel %vm120, %v512, 0.0
      %514 = vadd.xlane.f32.xlu0 %v513
      %v515 = vpop.xlane.xlu0 %514
      %v516 = vld [vmem:[#allocation3] sm:$0x1]
      %518 = vset.pattern.permute.xlu0 0
      %519 = vperm.xlu0 %518, %v516
      %v520 = vpop.permute.xlu0 %519
      %v522 = vperm.slane %v520, 0
      %v523 = vadd.f32 %v515, %v522
      %v525 = vlaneseq
      %v526 = vand.u32 %v525, 127
      %v527 = vperm.slane %v523, %v526
      %vm529 = vcmask 57344
      %530 = vst.msk [vmem:[#allocation10] sm:$0x1] %vm529, %v527
    $region57: #{tpu_custom_call.1} parent=1 // pred_fallthru
      _
    // Predicated region
    $region58: #{tpu_custom_call.1} parent=1 // pred_check
      _
    $region59: #{tpu_custom_call.1} parent=1 // pred_check_branch
      %532 = sbr.rel (0) target = $region61
    $region60: #{tpu_custom_call.1} parent=1 // pred_region
      %534 = vsyncadd [#allocation6], 0
      %s536 = sshll.u32 [#allocation10], 4
      %s537 = int_to_ptr.vmem [resolvable:$true] %s536
      %s538 = sshll.u32 %s9, 4
      %s539 = int_to_ptr.hbm [resolvable:$true] %s538
      %541 = dma.vmem_to_hbm [thread:$0]  %s537, 16, %s539, [#allocation6]
    $region61: #{tpu_custom_call.1} parent=1 // pred_fallthru
      _
    // Predicated region
    $region62: #{tpu_custom_call.1} parent=1 // pred_check
      _
    $region63: #{tpu_custom_call.1} parent=1 // pred_check_branch
      %543 = sbr.rel (0) target = $region65
    $region64: #{tpu_custom_call.1} parent=1 // pred_region
      %545 = dma.done [#allocation6], 16
    $region65: #{tpu_custom_call.1} parent=1 // pred_fallthru
      _
    %546 = vsyncpa [#allocation5], 1
    %547 = vsyncpa [#allocation8], 1
    %548 = vsyncpa [#allocation6], 1

// kernel: tpu_custom_call.1
$region0: #{tpu_custom_call.1}
  #allocation0 [shape = 'u32[]', space=smem, size = 0x4, offset = 0x4, fixed_abs, tag = 'smem constant byte address 0x4 - core index']
  #allocation1 [shape = 'u32[72,128]{1,0:T(1,128)}', space=vmem, size = 0x9000, scoped, tag = 'internal scratch']
  #allocation2 [shape = 'f32[8,8,32]{2,1,0:T(8,128)}', space=vmem, size = 0x8000, scoped, tag = 'scratch operand']
  #allocation3 [shape = 'f32[1,1]{1,0:T(1,128)S(1)}', space=vmem, size = 0x200, scoped, tag = 'scoped memory for tpu_custom_call.1']
  %s0 = inlined_call_operand.hbm [shape: f32[8,8,32], index: 0, kind: input, shape index: {}]
  %s1 = inlined_call_operand.vmem [shape: f32[1,32], index: 1, kind: input, shape index: {}]
  %s2 = inlined_call_operand.vmem [shape: f32[1,32], index: 2, kind: input, shape index: {}]
  %s3 = inlined_call_operand.hbm [shape: bf16[32,32], index: 3, kind: input, shape index: {}]
  %s4 = inlined_call_operand.vmem [shape: f32[1,32], index: 4, kind: input, shape index: {}]
  %s5 = inlined_call_operand.hbm [shape: bf16[32,32], index: 5, kind: input, shape index: {}]
  %s6 = inlined_call_operand.vmem [shape: f32[1,32], index: 6, kind: input, shape index: {}]
  %s7 = inlined_call_operand.vmem [shape: f32[1,32], index: 7, kind: input, shape index: {}]
  %s8 = inlined_call_operand.<no memory space> [shape: f32[1,1], index: 8, kind: input, shape index: {}]
  %s9 = inlined_call_operand.hbm [shape: f32[1,1,8], index: 9, kind: output, shape index: {}]
  %s10 = sld [smem:[#allocation0]]
  $region66: #{tpu_custom_call.1} parent=0
    _
  %s12 = ssub.s32 1, %s10
  %s13 = scalar_select 0, %s12, %s10
  %v14 = vstv %s8
  %15 = vst [vmem:[#allocation3] sm:$0x1] %v14
  $region1: #{tpu_custom_call.1} parent=0
    #allocation4 [shape = 'u8[32768]{0}', space=vmem, size = 0x8000, scoped, tag = 'input window, operand 0, single buffered']
    #allocation5 [shape = 's32[1]{0}', space=sflag, size = 0x4, scoped, tag = 'scoped memory for tpu_custom_call.1']
    #allocation6 [shape = 's32[1]{0}', space=sflag, size = 0x4, scoped, tag = 'scoped memory for tpu_custom_call.1']
    #allocation7 [shape = 'u8[8192]{0}', space=vmem, size = 0x2000, scoped, tag = 'input window, operand 3, single buffered']
    #allocation8 [shape = 's32[1]{0}', space=sflag, size = 0x4, scoped, tag = 'scoped memory for tpu_custom_call.1']
    #allocation9 [shape = 'u8[8192]{0}', space=vmem, size = 0x2000, scoped, tag = 'input window, operand 5, single buffered']
    #allocation10 [shape = 'u8[512]{0}', space=vmem, size = 0x400, scoped, tag = 'output window, operand 0, single buffered']
    %16 = vsyncpa [#allocation5], 0
    %17 = vsyncpa [#allocation8], 0
    %18 = vsyncpa [#allocation6], 0
    // Predicated region
    $region2: #{tpu_custom_call.1} parent=1 // pred_check
      _
    $region3: #{tpu_custom_call.1} parent=1 // pred_check_branch
      %20 = sbr.rel (0) target = $region5
    $region4: #{tpu_custom_call.1} parent=1 // pred_region
      %22 = vsyncadd [#allocation5], 0
      %s23 = sshll.u32 %s0, 4
      %s24 = int_to_ptr.hbm [resolvable:$true] %s23
      %s25 = sshll.u32 [#allocation4], 4
      %s26 = int_to_ptr.vmem [resolvable:$true] %s25
      %31 = dma.hbm_to_vmem [thread:$0]  %s24, 1024, %s26, [#allocation5], 128, 128, 8
    $region5: #{tpu_custom_call.1} parent=1 // pred_fallthru
      _
    // Predicated region
    $region6: #{tpu_custom_call.1} parent=1 // pred_check
      _
    $region7: #{tpu_custom_call.1} parent=1 // pred_check_branch
      %33 = sbr.rel (0) target = $region9
    $region8: #{tpu_custom_call.1} parent=1 // pred_region
      _
    $region9: #{tpu_custom_call.1} parent=1 // pred_fallthru
      _
    // Predicated region
    $region10: #{tpu_custom_call.1} parent=1 // pred_check
      _
    $region11: #{tpu_custom_call.1} parent=1 // pred_check_branch
      %35 = sbr.rel (0) target = $region13
    $region12: #{tpu_custom_call.1} parent=1 // pred_region
      _
    $region13: #{tpu_custom_call.1} parent=1 // pred_fallthru
      _
    // Predicated region
    $region14: #{tpu_custom_call.1} parent=1 // pred_check
      _
    $region15: #{tpu_custom_call.1} parent=1 // pred_check_branch
      %37 = sbr.rel (0) target = $region17
    $region16: #{tpu_custom_call.1} parent=1 // pred_region
      %39 = vsyncadd [#allocation8], 0
      %s40 = sshll.u32 %s3, 4
      %s41 = int_to_ptr.hbm [resolvable:$true] %s40
      %s42 = sshll.u32 [#allocation7], 4
      %s43 = int_to_ptr.vmem [resolvable:$true] %s42
      %48 = dma.hbm_to_vmem [thread:$0]  %s41, 256, %s43, [#allocation8], 64, 64, 4
    $region17: #{tpu_custom_call.1} parent=1 // pred_fallthru
      _
    // Predicated region
    $region18: #{tpu_custom_call.1} parent=1 // pred_check
      _
    $region19: #{tpu_custom_call.1} parent=1 // pred_check_branch
      %50 = sbr.rel (0) target = $region21
    $region20: #{tpu_custom_call.1} parent=1 // pred_region
      _
    $region21: #{tpu_custom_call.1} parent=1 // pred_fallthru
      _
    // Predicated region
    $region22: #{tpu_custom_call.1} parent=1 // pred_check
      _
    $region23: #{tpu_custom_call.1} parent=1 // pred_check_branch
      %52 = sbr.rel (0) target = $region25
    $region24: #{tpu_custom_call.1} parent=1 // pred_region
      %54 = vsyncadd [#allocation8], 0
      %s55 = sshll.u32 %s5, 4
      %s56 = int_to_ptr.hbm [resolvable:$true] %s55
      %s57 = sshll.u32 [#allocation9], 4
      %s58 = int_to_ptr.vmem [resolvable:$true] %s57
      %63 = dma.hbm_to_vmem [thread:$0]  %s56, 256, %s58, [#allocation8], 64, 64, 4
    $region25: #{tpu_custom_call.1} parent=1 // pred_fallthru
      _
    // Predicated region
    $region26: #{tpu_custom_call.1} parent=1 // pred_check
      _
    $region27: #{tpu_custom_call.1} parent=1 // pred_check_branch
      %65 = sbr.rel (0) target = $region29
    $region28: #{tpu_custom_call.1} parent=1 // pred_region
      _
    $region29: #{tpu_custom_call.1} parent=1 // pred_fallthru
      _
    // Predicated region
    $region30: #{tpu_custom_call.1} parent=1 // pred_check
      _
    $region31: #{tpu_custom_call.1} parent=1 // pred_check_branch
      %67 = sbr.rel (0) target = $region33
    $region32: #{tpu_custom_call.1} parent=1 // pred_region
      _
    $region33: #{tpu_custom_call.1} parent=1 // pred_fallthru
      _
    // Predicated region
    $region34: #{tpu_custom_call.1} parent=1 // pred_check
      _
    $region35: #{tpu_custom_call.1} parent=1 // pred_check_branch
      %69 = sbr.rel (0) target = $region37
    $region36: #{tpu_custom_call.1} parent=1 // pred_region
      _
    $region37: #{tpu_custom_call.1} parent=1 // pred_fallthru
      _
    // Predicated region
    $region38: #{tpu_custom_call.1} parent=1 // pred_check
      _
    $region39: #{tpu_custom_call.1} parent=1 // pred_check_branch
      %71 = sbr.rel (0) target = $region41
    $region40: #{tpu_custom_call.1} parent=1 // pred_region
      %73 = dma.done [#allocation5], 1024
    $region41: #{tpu_custom_call.1} parent=1 // pred_fallthru
      _
    // Predicated region
    $region42: #{tpu_custom_call.1} parent=1 // pred_check
      _
    $region43: #{tpu_custom_call.1} parent=1 // pred_check_branch
      %75 = sbr.rel (0) target = $region45
    $region44: #{tpu_custom_call.1} parent=1 // pred_region
      %77 = dma.done [#allocation8], 256
    $region45: #{tpu_custom_call.1} parent=1 // pred_fallthru
      _
    // Predicated region
    $region46: #{tpu_custom_call.1} parent=1 // pred_check
      _
    $region47: #{tpu_custom_call.1} parent=1 // pred_check_branch
      %79 = sbr.rel (0) target = $region49
    $region48: #{tpu_custom_call.1} parent=1 // pred_region
      %81 = dma.done [#allocation8], 256
    $region49: #{tpu_custom_call.1} parent=1 // pred_fallthru
      _
    %p83 = scmp.eq.s32.totalorder 0, 0
    // Predicated region
    $region50: #{tpu_custom_call.1} parent=1 // pred_check
      %p84 = pneg %p83
    $region51: #{tpu_custom_call.1} parent=1 // pred_check_branch
      %86 = sbr.rel (%p84) target = $region53
    $region52: #{tpu_custom_call.1} parent=1 // pred_region
      %vm87 = vcmask 261120
      %88 = vst.msk [vmem:[#allocation2] sm:$0xff] %vm87, 0.0
      %89 = vst.msk [vmem:[#allocation2 + $0x8] sm:$0xff] %vm87, 0.0
      %90 = vst.msk [vmem:[#allocation2 + $0x10] sm:$0xff] %vm87, 0.0
      %91 = vst.msk [vmem:[#allocation2 + $0x18] sm:$0xff] %vm87, 0.0
      %92 = vst.msk [vmem:[#allocation2 + $0x20] sm:$0xff] %vm87, 0.0
      %93 = vst.msk [vmem:[#allocation2 + $0x28] sm:$0xff] %vm87, 0.0
      %94 = vst.msk [vmem:[#allocation2 + $0x30] sm:$0xff] %vm87, 0.0
      %95 = vst.msk [vmem:[#allocation2 + $0x38] sm:$0xff] %vm87, 0.0
    $region53: #{tpu_custom_call.1} parent=1 // pred_fallthru
      _
    %v96 = vld [vmem:[#allocation4] sm:$0xff]
    %v97 = vld [vmem:[#allocation4 + $0x8] sm:$0xff]
    %v98 = vld [vmem:[#allocation4 + $0x10] sm:$0xff]
    %v99 = vld [vmem:[#allocation4 + $0x18] sm:$0xff]
    %v100 = vld [vmem:[#allocation4 + $0x20] sm:$0xff]
    %v101 = vld [vmem:[#allocation4 + $0x28] sm:$0xff]
    %v102 = vld [vmem:[#allocation4 + $0x30] sm:$0xff]
    %v103 = vld [vmem:[#allocation4 + $0x38] sm:$0xff]
    %v104 = vld [vmem:[#allocation2] sm:$0xff]
    %v105 = vld [vmem:[#allocation2 + $0x8] sm:$0xff]
    %v106 = vld [vmem:[#allocation2 + $0x10] sm:$0xff]
    %v107 = vld [vmem:[#allocation2 + $0x18] sm:$0xff]
    %v108 = vld [vmem:[#allocation2 + $0x20] sm:$0xff]
    %v109 = vld [vmem:[#allocation2 + $0x28] sm:$0xff]
    %v110 = vld [vmem:[#allocation2 + $0x30] sm:$0xff]
    %v111 = vld [vmem:[#allocation2 + $0x38] sm:$0xff]
    %v112 = vadd.f32 %v104, %v96
    %v113 = vadd.f32 %v105, %v97
    %v114 = vadd.f32 %v106, %v98
    %v115 = vadd.f32 %v107, %v99
    %v116 = vadd.f32 %v108, %v100
    %v117 = vadd.f32 %v109, %v101
    %v118 = vadd.f32 %v110, %v102
    %v119 = vadd.f32 %v111, %v103
    %vm120 = vcmask 261120
    %121 = vst.msk [vmem:[#allocation2] sm:$0xff] %vm120, %v112
    %122 = vst.msk [vmem:[#allocation2 + $0x8] sm:$0xff] %vm120, %v113
    %123 = vst.msk [vmem:[#allocation2 + $0x10] sm:$0xff] %vm120, %v114
    %124 = vst.msk [vmem:[#allocation2 + $0x18] sm:$0xff] %vm120, %v115
    %125 = vst.msk [vmem:[#allocation2 + $0x20] sm:$0xff] %vm120, %v116
    %126 = vst.msk [vmem:[#allocation2 + $0x28] sm:$0xff] %vm120, %v117
    %127 = vst.msk [vmem:[#allocation2 + $0x30] sm:$0xff] %vm120, %v118
    %128 = vst.msk [vmem:[#allocation2 + $0x38] sm:$0xff] %vm120, %v119
    // Predicated region
    $region54: #{tpu_custom_call.1} parent=1 // pred_check
      %p129 = pneg %p83
    $region55: #{tpu_custom_call.1} parent=1 // pred_check_branch
      %131 = sbr.rel (%p129) target = $region57
    $region56: #{tpu_custom_call.1} parent=1 // pred_region
      %v132 = vld [vmem:[#allocation2] sm:$0xff]
      %v133 = vld [vmem:[#allocation2 + $0x8] sm:$0xff]
      %v134 = vld [vmem:[#allocation2 + $0x10] sm:$0xff]
      %v135 = vld [vmem:[#allocation2 + $0x18] sm:$0xff]
      %v136 = vld [vmem:[#allocation2 + $0x20] sm:$0xff]
      %v137 = vld [vmem:[#allocation2 + $0x28] sm:$0xff]
      %v138 = vld [vmem:[#allocation2 + $0x30] sm:$0xff]
      %v139 = vld [vmem:[#allocation2 + $0x38] sm:$0xff]
      %v140 = vsel %vm120, %v132, 0.0
      %v141 = vrot.slane %v140, 4
      %v142 = vadd.f32 %v140, %v141
      %v143 = vrot.slane %v142, 2
      %v144 = vadd.f32 %v142, %v143
      %v145 = vrot.slane %v144, 1
      %v146 = vadd.f32 %v144, %v145
      %v147 = vsel %vm120, %v133, 0.0
      %v148 = vrot.slane %v147, 4
      %v149 = vadd.f32 %v147, %v148
      %v150 = vrot.slane %v149, 2
      %v151 = vadd.f32 %v149, %v150
      %v152 = vrot.slane %v151, 1
      %v153 = vadd.f32 %v151, %v152
      %v154 = vsel %vm120, %v134, 0.0
      %v155 = vrot.slane %v154, 4
      %v156 = vadd.f32 %v154, %v155
      %v157 = vrot.slane %v156, 2
      %v158 = vadd.f32 %v156, %v157
      %v159 = vrot.slane %v158, 1
      %v160 = vadd.f32 %v158, %v159
      %v161 = vsel %vm120, %v135, 0.0
      %v162 = vrot.slane %v161, 4
      %v163 = vadd.f32 %v161, %v162
      %v164 = vrot.slane %v163, 2
      %v165 = vadd.f32 %v163, %v164
      %v166 = vrot.slane %v165, 1
      %v167 = vadd.f32 %v165, %v166
      %v168 = vsel %vm120, %v136, 0.0
      %v169 = vrot.slane %v168, 4
      %v170 = vadd.f32 %v168, %v169
      %v171 = vrot.slane %v170, 2
      %v172 = vadd.f32 %v170, %v171
      %v173 = vrot.slane %v172, 1
      %v174 = vadd.f32 %v172, %v173
      %v175 = vsel %vm120, %v137, 0.0
      %v176 = vrot.slane %v175, 4
      %v177 = vadd.f32 %v175, %v176
      %v178 = vrot.slane %v177, 2
      %v179 = vadd.f32 %v177, %v178
      %v180 = vrot.slane %v179, 1
      %v181 = vadd.f32 %v179, %v180
      %v182 = vsel %vm120, %v138, 0.0
      %v183 = vrot.slane %v182, 4
      %v184 = vadd.f32 %v182, %v183
      %v185 = vrot.slane %v184, 2
      %v186 = vadd.f32 %v184, %v185
      %v187 = vrot.slane %v186, 1
      %v188 = vadd.f32 %v186, %v187
      %v189 = vsel %vm120, %v139, 0.0
      %v190 = vrot.slane %v189, 4
      %v191 = vadd.f32 %v189, %v190
      %v192 = vrot.slane %v191, 2
      %v193 = vadd.f32 %v191, %v192
      %v194 = vrot.slane %v193, 1
      %v195 = vadd.f32 %v193, %v194
      %v196 = vmul.f32 %v146, 0.125
      %v197 = vmul.f32 %v153, 0.125
      %v198 = vmul.f32 %v160, 0.125
      %v199 = vmul.f32 %v167, 0.125
      %v200 = vmul.f32 %v174, 0.125
      %v201 = vmul.f32 %v181, 0.125
      %v202 = vmul.f32 %v188, 0.125
      %v203 = vmul.f32 %v195, 0.125
      %vm212 = vcmask 1041409
      %v213 = vsel %vm212, %v197, %v196
      %vm214 = vcmask 1042434
      %v215 = vsel %vm214, %v198, %v213
      %vm216 = vcmask 1043459
      %v217 = vsel %vm216, %v199, %v215
      %vm218 = vcmask 1044484
      %v219 = vsel %vm218, %v200, %v217
      %vm220 = vcmask 1045509
      %v221 = vsel %vm220, %v201, %v219
      %vm222 = vcmask 1046534
      %v223 = vsel %vm222, %v202, %v221
      %vm224 = vcmask 1047559
      %v225 = vsel %vm224, %v203, %v223
      %v227 = vsel %vm120, %v225, 0.0
      %228 = vadd.xlane.f32.xlu0 %v227
      %v229 = vpop.xlane.xlu0 %228
      %v230 = vrcp.pop 32.0
      %v231 = vmul.f32 32.0, %v230
      %v232 = vsub.f32 1.0, %v231
      %v233 = vmul.f32 %v230, %v232
      %v234 = vadd.f32 %v230, %v233
      %vm235 = vweird.f32 %v230
      %v236 = vsel %vm235, %v230, %v234
      %v237 = vmul.f32 %v229, %v236
      %v239 = vrot.slane %v237, 1
      %v240 = vrot.slane %v237, 2
      %v241 = vrot.slane %v237, 3
      %v242 = vrot.slane %v237, 4
      %v243 = vrot.slane %v237, 5
      %v244 = vrot.slane %v237, 6
      %v245 = vrot.slane %v237, 7
      %v254 = vsub.f32 %v196, %v237
      %v255 = vsub.f32 %v197, %v239
      %v256 = vsub.f32 %v198, %v240
      %v257 = vsub.f32 %v199, %v241
      %v258 = vsub.f32 %v200, %v242
      %v259 = vsub.f32 %v201, %v243
      %v260 = vsub.f32 %v202, %v244
      %v261 = vsub.f32 %v203, %v245
      %v262 = vmul.f32 %v254, %v254
      %v263 = vmul.f32 %v255, %v255
      %v264 = vmul.f32 %v256, %v256
      %v265 = vmul.f32 %v257, %v257
      %v266 = vmul.f32 %v258, %v258
      %v267 = vmul.f32 %v259, %v259
      %v268 = vmul.f32 %v260, %v260
      %v269 = vmul.f32 %v261, %v261
      %v278 = vrot.slane %v263, 7
      %v279 = vsel %vm212, %v278, %v262
      %v280 = vrot.slane %v264, 6
      %v281 = vsel %vm214, %v280, %v279
      %v282 = vrot.slane %v265, 5
      %v283 = vsel %vm216, %v282, %v281
      %v284 = vrot.slane %v266, 4
      %v285 = vsel %vm218, %v284, %v283
      %v286 = vrot.slane %v267, 3
      %v287 = vsel %vm220, %v286, %v285
      %v288 = vrot.slane %v268, 2
      %v289 = vsel %vm222, %v288, %v287
      %v290 = vrot.slane %v269, 1
      %v291 = vsel %vm224, %v290, %v289
      %v293 = vsel %vm120, %v291, 0.0
      %294 = vadd.xlane.f32.xlu0 %v293
      %v295 = vpop.xlane.xlu0 %294
      %v296 = vmul.f32 %v295, %v236
      %v297 = vadd.f32 %v296, 1e-05
      %v298 = vrsqrt.pop %v297
      %v299 = vmul.f32 %v298, %v297
      %v300 = vmul.f32 %v299, %v298
      %v301 = vmul.f32 0.5, %v300
      %v302 = vsub.f32 1.5, %v301
      %v303 = vmul.f32 %v298, %v302
      %vm304 = vweird.f32 %v297
      %vm305 = vweird.f32 %v298
      %vm306 = vmor %vm304, %vm305
      %v307 = vsel %vm306, %v298, %v303
      %v309 = vrot.slane %v307, 1
      %v310 = vrot.slane %v307, 2
      %v311 = vrot.slane %v307, 3
      %v312 = vrot.slane %v307, 4
      %v313 = vrot.slane %v307, 5
      %v314 = vrot.slane %v307, 6
      %v315 = vrot.slane %v307, 7
      %v324 = vmul.f32 %v254, %v307
      %v325 = vmul.f32 %v255, %v309
      %v326 = vmul.f32 %v256, %v310
      %v327 = vmul.f32 %v257, %v311
      %v328 = vmul.f32 %v258, %v312
      %v329 = vmul.f32 %v259, %v313
      %v330 = vmul.f32 %v260, %v314
      %v331 = vmul.f32 %v261, %v315
      %v332 = vld [vmem:[%s1] sm:$0x1]
      %v334 = vperm.slane %v332, 0
      %v336 = vmul.f32 %v324, %v334
      %v337 = vmul.f32 %v325, %v334
      %v338 = vmul.f32 %v326, %v334
      %v339 = vmul.f32 %v327, %v334
      %v340 = vmul.f32 %v328, %v334
      %v341 = vmul.f32 %v329, %v334
      %v342 = vmul.f32 %v330, %v334
      %v343 = vmul.f32 %v331, %v334
      %v344 = vld [vmem:[%s2] sm:$0x1]
      %v346 = vperm.slane %v344, 0
      %v348 = vadd.f32 %v336, %v346
      %v349 = vadd.f32 %v337, %v346
      %v350 = vadd.f32 %v338, %v346
      %v351 = vadd.f32 %v339, %v346
      %v352 = vadd.f32 %v340, %v346
      %v353 = vadd.f32 %v341, %v346
      %v354 = vadd.f32 %v342, %v346
      %v355 = vadd.f32 %v343, %v346
      %v356 = vpack.c.bf16 %v348, %v348
      %v357 = vpack.c.bf16 %v349, %v349
      %v358 = vpack.c.bf16 %v350, %v350
      %v359 = vpack.c.bf16 %v351, %v351
      %v360 = vpack.c.bf16 %v352, %v352
      %v361 = vpack.c.bf16 %v353, %v353
      %v362 = vpack.c.bf16 %v354, %v354
      %v363 = vpack.c.bf16 %v355, %v355
      %v364 = vld [vmem:[#allocation7] sm:$0xf]
      %v365 = vld [vmem:[#allocation7 + $0x4] sm:$0xf]
      %v366 = vld [vmem:[#allocation7 + $0x8] sm:$0xf]
      %v367 = vld [vmem:[#allocation7 + $0xc] sm:$0xf]
      %v368 = vld [vmem:[%s4] sm:$0x1]
      %v370 = vperm.slane %v368, 0
      %v380 = vunpack.c.l.b16 %v356
      %v381 = vunpack.c.l.b16 %v357
      %v382 = vunpack.c.l.b16 %v358
      %v383 = vunpack.c.l.b16 %v359
      %v384 = vunpack.c.l.b16 %v360
      %v385 = vunpack.c.l.b16 %v361
      %v386 = vunpack.c.l.b16 %v362
      %v387 = vunpack.c.l.b16 %v363
      %v388 = vrot.slane %v381, 7
      %v389 = vsel %vm212, %v388, %v380
      %v390 = vrot.slane %v382, 6
      %v391 = vsel %vm214, %v390, %v389
      %v392 = vrot.slane %v383, 5
      %v393 = vsel %vm216, %v392, %v391
      %v394 = vrot.slane %v384, 4
      %v395 = vsel %vm218, %v394, %v393
      %v396 = vrot.slane %v385, 3
      %v397 = vsel %vm220, %v396, %v395
      %v398 = vrot.slane %v386, 2
      %v399 = vsel %vm222, %v398, %v397
      %v400 = vrot.slane %v387, 1
      %v401 = vsel %vm224, %v400, %v399
      %v402 = vpack.c.b16 %v401, %v401
      %v407 = vunpack.c.l.b16 %v364
      %v408 = vunpack.c.l.b16 %v365
      %v409 = vunpack.c.l.b16 %v366
      %v410 = vunpack.c.l.b16 %v367
      %v411 = vpack.c.b16 %v408, %v407
      %v412 = vpack.c.b16 %v410, %v409
      %v416 = vsel %vm120, %v402, 0
      %418 = vmatpush.bf16.msra.mxu0 0
      %419 = vmatpush.bf16.msra.mxu0 0
      %420 = vmatpush.bf16.msra.mxu0 0
      %421 = vmatpush.bf16.msra.mxu0 0
      %422 = vmatpush.bf16.msra.mxu0 0
      %423 = vmatpush.bf16.msra.mxu0 0
      %424 = vmatpush.bf16.msra.mxu0 %v412
      %425 = vmatpush.bf16.msra.mxu0 %v411
      %426 = vmatmul.bf16.gmra.mxu0 %v416
      %v427 = vpop.f32.mrf.mxu0
      %v428 = vadd.f32 %v370, %v427
      %v429 = vpop.f32.mrf.mxu0
      %430 = vdwg.mxu0
      %v431 = vxor.u32 %v428, 2147483648
      %v432 = vmul.f32 %v431, 1.442695
      %v433 = vpow.pop %v432
      %v434 = vadd.f32 %v433, 1.0
      %v435 = vrcp.pop %v434
      %v436 = vmul.f32 %v434, %v435
      %v437 = vsub.f32 1.0, %v436
      %v438 = vmul.f32 %v435, %v437
      %v439 = vadd.f32 %v435, %v438
      %vm440 = vweird.f32 %v434
      %vm441 = vweird.f32 %v435
      %vm442 = vmor %vm440, %vm441
      %v443 = vsel %vm442, %v435, %v439
      %v444 = vand.u32 2147483647, %v434
      %vm445 = vcmp.eq.f32.partialorder %v444, 8.507059e+37
      %v446 = vand.u32 %v434, 2147483648
      %v447 = vor.u32 1.1754944e-38, %v446
      %v448 = vsel %vm445, %v447, %v443
      %v449 = vmul.f32 1.0, %v448
      %v450 = vmul.f32 %v428, %v449
      %v451 = vpack.c.bf16 %v450, %v450
      %v452 = vld [vmem:[#allocation9] sm:$0xf]
      %v453 = vld [vmem:[#allocation9 + $0x4] sm:$0xf]
      %v454 = vld [vmem:[#allocation9 + $0x8] sm:$0xf]
      %v455 = vld [vmem:[#allocation9 + $0xc] sm:$0xf]
      %v456 = vld [vmem:[%s6] sm:$0x1]
      %v458 = vperm.slane %v456, 0
      %v464 = vunpack.c.l.b16 %v452
      %v465 = vunpack.c.l.b16 %v453
      %v466 = vunpack.c.l.b16 %v454
      %v467 = vunpack.c.l.b16 %v455
      %v468 = vpack.c.b16 %v465, %v464
      %v469 = vpack.c.b16 %v467, %v466
      %v473 = vsel %vm120, %v451, 0
      %475 = vmatpush.bf16.msra.mxu0 0
      %476 = vmatpush.bf16.msra.mxu0 0
      %477 = vmatpush.bf16.msra.mxu0 0
      %478 = vmatpush.bf16.msra.mxu0 0
      %479 = vmatpush.bf16.msra.mxu0 0
      %480 = vmatpush.bf16.msra.mxu0 0
      %481 = vmatpush.bf16.msra.mxu0 %v469
      %482 = vmatpush.bf16.msra.mxu0 %v468
      %483 = vmatmul.bf16.gmra.mxu0 %v473
      %v484 = vpop.f32.mrf.mxu0
      %v485 = vadd.f32 %v458, %v484
      %v486 = vpop.f32.mrf.mxu0
      %487 = vdwg.mxu0
      %v488 = vxor.u32 %v485, 2147483648
      %v489 = vmul.f32 %v488, 1.442695
      %v490 = vpow.pop %v489
      %v491 = vadd.f32 %v490, 1.0
      %v492 = vrcp.pop %v491
      %v493 = vmul.f32 %v491, %v492
      %v494 = vsub.f32 1.0, %v493
      %v495 = vmul.f32 %v492, %v494
      %v496 = vadd.f32 %v492, %v495
      %vm497 = vweird.f32 %v491
      %vm498 = vweird.f32 %v492
      %vm499 = vmor %vm497, %vm498
      %v500 = vsel %vm499, %v492, %v496
      %v501 = vand.u32 2147483647, %v491
      %vm502 = vcmp.eq.f32.partialorder %v501, 8.507059e+37
      %v503 = vand.u32 %v491, 2147483648
      %v504 = vor.u32 1.1754944e-38, %v503
      %v505 = vsel %vm502, %v504, %v500
      %v506 = vmul.f32 1.0, %v505
      %v507 = vmul.f32 %v485, %v506
      %v508 = vld [vmem:[%s7] sm:$0x1]
      %v510 = vperm.slane %v508, 0
      %v512 = vmul.f32 %v507, %v510
      %v513 = vsel %vm120, %v512, 0.0
      %514 = vadd.xlane.f32.xlu0 %v513
      %v515 = vpop.xlane.xlu0 %514
      %v516 = vld [vmem:[#allocation3] sm:$0x1]
      %518 = vset.pattern.permute.xlu0 0
      %519 = vperm.xlu0 %518, %v516
      %v520 = vpop.permute.xlu0 %519
      %v522 = vperm.slane %v520, 0
      %v523 = vadd.f32 %v515, %v522
      %v525 = vlaneseq
      %v526 = vand.u32 %v525, 127
      %v527 = vperm.slane %v523, %v526
      %vm529 = vcmask 57344
      %530 = vst.msk [vmem:[#allocation10] sm:$0x1] %vm529, %v527
    $region57: #{tpu_custom_call.1} parent=1 // pred_fallthru
      _
    // Predicated region
    $region58: #{tpu_custom_call.1} parent=1 // pred_check
      _
    $region59: #{tpu_custom_call.1} parent=1 // pred_check_branch
      %532 = sbr.rel (0) target = $region61
    $region60: #{tpu_custom_call.1} parent=1 // pred_region
      %534 = vsyncadd [#allocation6], 0
      %s536 = sshll.u32 [#allocation10], 4
      %s537 = int_to_ptr.vmem [resolvable:$true] %s536
      %s538 = sshll.u32 %s9, 4
      %s539 = int_to_ptr.hbm [resolvable:$true] %s538
      %541 = dma.vmem_to_hbm [thread:$0]  %s537, 16, %s539, [#allocation6]
    $region61: #{tpu_custom_call.1} parent=1 // pred_fallthru
      _
    // Predicated region
    $region62: #{tpu_custom_call.1} parent=1 // pred_check
      _
    $region63: #{tpu_custom_call.1} parent=1 // pred_check_branch
      %543 = sbr.rel (0) target = $region65
    $region64: #{tpu_custom_call.1} parent=1 // pred_region
      %545 = dma.done [#allocation6], 16
    $region65: #{tpu_custom_call.1} parent=1 // pred_fallthru
      _
    %546 = vsyncpa [#allocation5], 1
    %547 = vsyncpa [#allocation8], 1
    %548 = vsyncpa [#allocation6], 1

</llo_original>
